<compile_context>
chip_gen: v7x
topology: tpu7x:2x2x1
jax: 0.10.0
libtpu: 0.0.40
codegen_flags: <defaults>
</compile_context>

<pallas_src>
import functools

import jax
import jax.numpy as jnp
import numpy as np
from jax import lax
from jax.experimental import pallas as pl
from jax.experimental.pallas import tpu as pltpu

_SQRT_HALF = 0.7071067811865476


def _round_up(x, m):
    return ((x + m - 1) // m) * m


def _head_kernel(gnn_ref, cnn_ref, wg_ref, wc_ref, bproj_ref, gamma_ref, beta_ref,
                 wpol_ref, bpol_ref, wval_ref, bval_ref,
                 pol_out_ref, val_out_ref, *, n_nodes, real_e, e_pad):
    f32 = jnp.float32
    inv_n = f32(1.0 / n_nodes)

    # ---- mean pooling over the 64 board squares (sum * 1/64). gnn: sublane reduce (axis 1);
    #      cnn kept in native (TB, E, 64) layout: lane reduce (axis 2) on the XLU. ----
    g_pool = jnp.sum(gnn_ref[...].astype(f32), axis=1) * inv_n      # (TB, E)
    c_pool = jnp.sum(cnn_ref[...].astype(f32), axis=2) * inv_n      # (TB, E)

    # ---- fused = concat([g_pool, c_pool]) @ W_proj + b as a split-K MXU matmul (K = E). ----
    h = (jnp.dot(g_pool, wg_ref[...], preferred_element_type=f32)
         + jnp.dot(c_pool, wc_ref[...], preferred_element_type=f32)
         + bproj_ref[...])                                          # (TB, E_pad); pad lanes = 0

    # ---- GELU (exact erf form = torch.nn.GELU default). GELU(0)=0 keeps pad lanes 0. ----
    h = 0.5 * h * (1.0 + lax.erf(h * f32(_SQRT_HALF)))

    # ---- LayerNorm over the real E lanes (eps=1e-5, elementwise affine). ----
    inv_e = f32(1.0 / real_e)
    mu = jnp.sum(h, axis=-1, keepdims=True) * inv_e                 # pad lanes contribute 0
    hc = h - mu
    if real_e != e_pad:                                             # static branch
        lane = lax.broadcasted_iota(jnp.int32, (1, e_pad), 1)
        hc = hc * (lane < real_e).astype(f32)                       # re-zero pad lanes for var
    var = jnp.sum(hc * hc, axis=-1, keepdims=True) * inv_e
    hn = hc * lax.rsqrt(var + f32(1e-5))
    hn = hn * gamma_ref[...] + beta_ref[...]                        # gamma/beta zero-padded

    # ---- policy / value heads: store straight to the output refs (no big intermediate). ----
    pol_out_ref[...] = (jnp.dot(hn, wpol_ref[...], preferred_element_type=f32)
                        + bpol_ref[...])
    val_out_ref[...] = jnp.tanh(jnp.dot(hn, wval_ref[...], preferred_element_type=f32)
                                + bval_ref[...])


def policy_value_head(gnn_nodes, cnn_feat, params, *, tb_max=512):
    """gnn_nodes: (B, 64, E); cnn_feat: (B, E, 64) native layout -> (policy (B,P), value (B,1))."""
    B, n_nodes, E = gnn_nodes.shape
    assert cnn_feat.shape == (B, E, n_nodes)
    P = params["w_pol"].shape[1]
    f32 = jnp.float32

    E_pad = _round_up(E, 128)
    P_pad = _round_up(P, 128)

    gnn_itemsize = gnn_nodes.dtype.itemsize
    cnn_itemsize = cnn_feat.dtype.itemsize

    # ---- generation-aware VMEM budget (v7x: 64 MiB phys -> ~48 MiB; v5e/v6e: 128 -> ~96). ----
    try:
        phys_vmem = int(pltpu.get_tpu_info().vmem_capacity_bytes)
    except Exception:
        phys_vmem = 64 * 1024 * 1024                     # conservative (v7x-sized) fallback
    vmem_limit = min(96 * 1024 * 1024, (phys_vmem * 3) // 4)

    # Budget the constants as double-buffered even though we request single buffering.
    const_bytes = 2 * 4 * (2 * E * E_pad + 3 * E_pad     # w_proj halves + b_proj/gamma/beta
                           + E_pad * P_pad + P_pad       # policy head
                           + E_pad * 128 + 128)          # value head
    per_row_bytes = 2 * (n_nodes * E * gnn_itemsize      # gnn tile (double-buffered)
                         + E * n_nodes * cnn_itemsize    # cnn tile (double-buffered)
                         + P_pad * 4 + 128 * 4)          # policy + value output tiles
    slack = 2 * 1024 * 1024
    usable = max(0, vmem_limit - const_bytes - slack)
    tb_fit = (usable // per_row_bytes) // 8 * 8
    if tb_fit < 8:                                       # guard the minimum-tile fallback
        tb_fit = 8
        vmem_limit = min(phys_vmem, const_bytes + slack + 8 * per_row_bytes)

    # Keep >= 2 grid steps when B allows so "parallel" can shard across both v7x TensorCores.
    tb_two_steps = max(8, _round_up((B + 1) // 2, 8))
    TB = max(8, min(tb_max, tb_fit, tb_two_steps))
    B_pad = _round_up(B, TB)

    # ---- pad ONLY the batch axis (no E padding of the heavy streams). ----
    if B_pad != B:
        gnn_in = jnp.pad(gnn_nodes, ((0, B_pad - B), (0, 0), (0, 0)))
        cnn_in = jnp.pad(cnn_feat, ((0, B_pad - B), (0, 0), (0, 0)))
    else:
        gnn_in, cnn_in = gnn_nodes, cnn_feat

    # ---- pad weights once (grid-invariant constants). ----
    w_proj = params["w_proj"].astype(f32)                           # (2E, E)
    wg = jnp.zeros((E, E_pad), f32).at[:, :E].set(w_proj[:E])
    wc = jnp.zeros((E, E_pad), f32).at[:, :E].set(w_proj[E:])
    b_proj = jnp.zeros((1, E_pad), f32).at[:, :E].set(params["b_proj"].astype(f32))
    gamma = jnp.zeros((1, E_pad), f32).at[:, :E].set(params["ln_gamma"].astype(f32))
    beta = jnp.zeros((1, E_pad), f32).at[:, :E].set(params["ln_beta"].astype(f32))
    w_pol = jnp.zeros((E_pad, P_pad), f32).at[:E, :P].set(params["w_pol"].astype(f32))
    b_pol = jnp.zeros((1, P_pad), f32).at[:, :P].set(params["b_pol"].astype(f32))
    w_val = jnp.zeros((E_pad, 128), f32).at[:E, :1].set(params["w_val"].astype(f32))
    b_val = jnp.zeros((1, 128), f32).at[:, :1].set(params["b_val"].astype(f32))

    kernel = functools.partial(_head_kernel, n_nodes=n_nodes, real_e=E, e_pad=E_pad)

    def _const_spec(shape, single_buffer):
        idx_map = lambda b, _s=shape: (0,) * len(_s)
        if single_buffer:
            return pl.BlockSpec(shape, idx_map, pipeline_mode=pl.Buffered(1))
        return pl.BlockSpec(shape, idx_map)

    def _run(single_buffer_consts):
        grid_spec = pltpu.PrefetchScalarGridSpec(
            num_scalar_prefetch=0,
            grid=(B_pad // TB,),
            in_specs=[
                pl.BlockSpec((TB, n_nodes, E), lambda b: (b, 0, 0)),   # gnn tile (unpadded E)
                pl.BlockSpec((TB, E, n_nodes), lambda b: (b, 0, 0)),   # cnn tile (native layout)
                _const_spec((E, E_pad), single_buffer_consts),          # w_proj (gnn half)
                _const_spec((E, E_pad), single_buffer_consts),          # w_proj (cnn half)
                _const_spec((1, E_pad), single_buffer_consts),          # b_proj
                _const_spec((1, E_pad), single_buffer_consts),          # ln gamma
                _const_spec((1, E_pad), single_buffer_consts),          # ln beta
                _const_spec((E_pad, P_pad), single_buffer_consts),      # policy W
                _const_spec((1, P_pad), single_buffer_consts),          # policy b
                _const_spec((E_pad, 128), single_buffer_consts),        # value W (col 0)
                _const_spec((1, 128), single_buffer_consts),            # value b (col 0)
            ],
            out_specs=[
                pl.BlockSpec((TB, P_pad), lambda b: (b, 0)),            # policy logits (padded)
                pl.BlockSpec((TB, 128), lambda b: (b, 0)),              # value (lane-dense)
            ],
        )
        return pl.pallas_call(
            kernel,
            out_shape=(jax.ShapeDtypeStruct((B_pad, P_pad), f32),
                       jax.ShapeDtypeStruct((B_pad, 128), f32)),
            grid_spec=grid_spec,
            compiler_params=pltpu.CompilerParams(
                dimension_semantics=("parallel",),
                vmem_limit_bytes=int(vmem_limit),
            ),
        )(gnn_in, cnn_in, wg, wc, b_proj, gamma, beta, w_pol, b_pol, w_val, b_val)

    want_single_buffer = hasattr(pl, "Buffered")
    try:
        pol_pad, val_pad = _run(want_single_buffer)
    except Exception:
        if not want_single_buffer:
            raise
        pol_pad, val_pad = _run(False)   # fall back to default double-buffered constants

    return pol_pad[:B, :P], val_pad[:B, :1]


def _reference(gnn_nodes, cnn_feat, params):
    g_pool = jnp.mean(gnn_nodes, axis=1)                      # (B, E)
    c_pool = jnp.mean(cnn_feat, axis=2)                       # (B, E)  cnn_feat is (B, E, 64)
    fused = jnp.concatenate([g_pool, c_pool], axis=-1)        # (B, 2E)
    h = fused @ params["w_proj"] + params["b_proj"][0]
    h = 0.5 * h * (1.0 + lax.erf(h / jnp.sqrt(2.0)))
    mu = jnp.mean(h, axis=-1, keepdims=True)
    var = jnp.mean((h - mu) ** 2, axis=-1, keepdims=True)
    hn = (h - mu) * lax.rsqrt(var + 1e-5)
    hn = hn * params["ln_gamma"][0] + params["ln_beta"][0]
    pol = hn @ params["w_pol"] + params["b_pol"][0]
    val = jnp.tanh(hn @ params["w_val"] + params["b_val"][0])
    return pol, val


def make_params(key, embed_dim, policy_size):
    ks = jax.random.split(key, 6)
    E, P = embed_dim, policy_size
    scale = 0.05
    return {
        "w_proj": (scale * jax.random.normal(ks[0], (2 * E, E))).astype(jnp.float32),
        "b_proj": (scale * jax.random.normal(ks[1], (1, E))).astype(jnp.float32),
        "ln_gamma": jnp.ones((1, E), jnp.float32),
        "ln_beta": jnp.zeros((1, E), jnp.float32),
        "w_pol": (scale * jax.random.normal(ks[2], (E, P))).astype(jnp.float32),
        "b_pol": (scale * jax.random.normal(ks[3], (1, P))).astype(jnp.float32),
        "w_val": (scale * jax.random.normal(ks[4], (E, 1))).astype(jnp.float32),
        "b_val": (scale * jax.random.normal(ks[5], (1, 1))).astype(jnp.float32),
    }


if __name__ == "__main__":
    B = 2                 # batch
    C_IN = 4              # cnn_in_channels (raw board planes, consumed by CNNModel)
    E = 32                # embed_dim
    P = 128               # policy_size (small synthetic)
    HW = 64               # 8x8 board squares

    key = jax.random.PRNGKey(0)
    k_gnn, k_cnn, k_raw, k_par = jax.random.split(key, 4)

    # Raw module input (shape documentation only; CNN/GNN bodies not provided):
    cnn_tensor_nchw = jax.random.normal(k_raw, (B, C_IN, 8, 8), jnp.float32)  # noqa: F841

    # Simulated submodule outputs (deterministic):
    gnn_nodes = jax.random.normal(k_gnn, (B, HW, E), jnp.float32)       # (B*64, E) reshaped
    cnn_out_nchw = jax.random.normal(k_cnn, (B, E, 8, 8), jnp.float32)  # CNNModel output
    cnn_feat = cnn_out_nchw.reshape(B, E, HW)                           # free reshape, NO transpose

    params = make_params(k_par, E, P)

    pol, val = policy_value_head(gnn_nodes, cnn_feat, params)
    jax.block_until_ready((pol, val))

    ref_pol, ref_val = _reference(gnn_nodes, cnn_feat, params)
    np.testing.assert_allclose(np.asarray(pol), np.asarray(ref_pol), rtol=2e-3, atol=2e-3)
    np.testing.assert_allclose(np.asarray(val), np.asarray(ref_val), rtol=2e-3, atol=2e-3)

    print("KERNEL_OK")
</pallas_src>

<mosaic_0001>
module attributes {stable_mosaic.version = 11 : i64} {
  func.func @_head_kernel(%arg0: i32, %arg1: memref<8x64x32xf32, #tpu.memory_space<vmem>>, %arg2: memref<8x32x64xf32, #tpu.memory_space<vmem>>, %arg3: memref<32x128xf32, #tpu.memory_space<vmem>>, %arg4: memref<32x128xf32, #tpu.memory_space<vmem>>, %arg5: memref<1x128xf32, #tpu.memory_space<vmem>>, %arg6: memref<1x128xf32, #tpu.memory_space<vmem>>, %arg7: memref<1x128xf32, #tpu.memory_space<vmem>>, %arg8: memref<128x128xf32, #tpu.memory_space<vmem>>, %arg9: memref<1x128xf32, #tpu.memory_space<vmem>>, %arg10: memref<128x128xf32, #tpu.memory_space<vmem>>, %arg11: memref<1x128xf32, #tpu.memory_space<vmem>>, %arg12: memref<8x128xf32, #tpu.memory_space<vmem>>, %arg13: memref<8x128xf32, #tpu.memory_space<vmem>>) attributes {dimension_semantics = [#tpu.dimension_semantics<parallel>], iteration_bounds = array<i64: 1>, scalar_prefetch = 0 : i64, scratch_operands = 0 : i64, tpu.core_type = #tpu.core_type<tc>, window_params = [{transform_indices = @transform_0, window_bounds = array<i64: 8, 64, 32>}, {transform_indices = @transform_1, window_bounds = array<i64: 8, 32, 64>}, {pipeline_mode = #tpu.pipeline_mode<synchronous>, transform_indices = @transform_2, window_bounds = array<i64: 32, 128>}, {pipeline_mode = #tpu.pipeline_mode<synchronous>, transform_indices = @transform_3, window_bounds = array<i64: 32, 128>}, {pipeline_mode = #tpu.pipeline_mode<synchronous>, transform_indices = @transform_4, window_bounds = array<i64: 1, 128>}, {pipeline_mode = #tpu.pipeline_mode<synchronous>, transform_indices = @transform_5, window_bounds = array<i64: 1, 128>}, {pipeline_mode = #tpu.pipeline_mode<synchronous>, transform_indices = @transform_6, window_bounds = array<i64: 1, 128>}, {pipeline_mode = #tpu.pipeline_mode<synchronous>, transform_indices = @transform_7, window_bounds = array<i64: 128, 128>}, {pipeline_mode = #tpu.pipeline_mode<synchronous>, transform_indices = @transform_8, window_bounds = array<i64: 1, 128>}, {pipeline_mode = #tpu.pipeline_mode<synchronous>, transform_indices = @transform_9, window_bounds = array<i64: 128, 128>}, {pipeline_mode = #tpu.pipeline_mode<synchronous>, transform_indices = @transform_10, window_bounds = array<i64: 1, 128>}, {transform_indices = @transform_11, window_bounds = array<i64: 8, 128>}, {transform_indices = @transform_12, window_bounds = array<i64: 8, 128>}]} {
    %c0 = arith.constant 0 : index
    %c0_0 = arith.constant 0 : index
    %c0_1 = arith.constant 0 : index
    %0 = vector.load %arg1[%c0, %c0_0, %c0_1] : memref<8x64x32xf32, #tpu.memory_space<vmem>>, vector<8x64x32xf32>
    %cst = arith.constant dense<0.000000e+00> : vector<8x32xf32>
    %1 = vector.multi_reduction <add>, %0, %cst [1] : vector<8x64x32xf32> to vector<8x32xf32>
    %cst_2 = arith.constant 1.562500e-02 : f32
    %2 = vector.broadcast %cst_2 : f32 to vector<8x32xf32>
    %3 = arith.mulf %1, %2 : vector<8x32xf32>
    %c0_3 = arith.constant 0 : index
    %c0_4 = arith.constant 0 : index
    %c0_5 = arith.constant 0 : index
    %4 = vector.load %arg2[%c0_3, %c0_4, %c0_5] : memref<8x32x64xf32, #tpu.memory_space<vmem>>, vector<8x32x64xf32>
    %cst_6 = arith.constant dense<0.000000e+00> : vector<8x32xf32>
    %5 = vector.multi_reduction <add>, %4, %cst_6 [2] : vector<8x32x64xf32> to vector<8x32xf32>
    %cst_7 = arith.constant 1.562500e-02 : f32
    %6 = vector.broadcast %cst_7 : f32 to vector<8x32xf32>
    %7 = arith.mulf %5, %6 : vector<8x32xf32>
    %c0_8 = arith.constant 0 : index
    %c0_9 = arith.constant 0 : index
    %8 = vector.load %arg3[%c0_8, %c0_9] : memref<32x128xf32, #tpu.memory_space<vmem>>, vector<32x128xf32>
    %cst_10 = arith.constant dense<0.000000e+00> : vector<8x128xf32>
    %9 = tpu.matmul %3, %8, %cst_10 {dimension_numbers = #tpu.dot_dimension_numbers<[1], [0], [0], [1], [0, 0, 1, 1], [], []>} : vector<8x32xf32>, vector<32x128xf32>, vector<8x128xf32> -> vector<8x128xf32>
    %c0_11 = arith.constant 0 : index
    %c0_12 = arith.constant 0 : index
    %10 = vector.load %arg4[%c0_11, %c0_12] : memref<32x128xf32, #tpu.memory_space<vmem>>, vector<32x128xf32>
    %cst_13 = arith.constant dense<0.000000e+00> : vector<8x128xf32>
    %11 = tpu.matmul %7, %10, %cst_13 {dimension_numbers = #tpu.dot_dimension_numbers<[1], [0], [0], [1], [0, 0, 1, 1], [], []>} : vector<8x32xf32>, vector<32x128xf32>, vector<8x128xf32> -> vector<8x128xf32>
    %12 = arith.addf %9, %11 : vector<8x128xf32>
    %c0_14 = arith.constant 0 : index
    %c0_15 = arith.constant 0 : index
    %13 = vector.load %arg5[%c0_14, %c0_15] : memref<1x128xf32, #tpu.memory_space<vmem>>, vector<1x128xf32>
    %14 = vector.broadcast %13 : vector<1x128xf32> to vector<8x128xf32>
    %15 = arith.addf %12, %14 : vector<8x128xf32>
    %cst_16 = arith.constant 5.000000e-01 : f32
    %16 = vector.broadcast %cst_16 : f32 to vector<8x128xf32>
    %17 = arith.mulf %16, %15 : vector<8x128xf32>
    %cst_17 = arith.constant 0.707106769 : f32
    %18 = vector.broadcast %cst_17 : f32 to vector<8x128xf32>
    %19 = arith.mulf %15, %18 : vector<8x128xf32>
    %20 = math.erf %19 : vector<8x128xf32>
    %cst_18 = arith.constant 1.000000e+00 : f32
    %21 = vector.broadcast %cst_18 : f32 to vector<8x128xf32>
    %22 = arith.addf %21, %20 : vector<8x128xf32>
    %23 = arith.mulf %17, %22 : vector<8x128xf32>
    %cst_19 = arith.constant dense<0.000000e+00> : vector<8xf32>
    %24 = vector.multi_reduction <add>, %23, %cst_19 [1] : vector<8x128xf32> to vector<8xf32>
    %25 = vector.shape_cast %24 : vector<8xf32> to vector<8x1xf32>
    %cst_20 = arith.constant 3.125000e-02 : f32
    %26 = vector.broadcast %cst_20 : f32 to vector<8x1xf32>
    %27 = arith.mulf %25, %26 : vector<8x1xf32>
    %28 = vector.broadcast %27 : vector<8x1xf32> to vector<8x128xf32>
    %29 = arith.subf %23, %28 : vector<8x128xf32>
    %30 = tpu.iota {dimensions = array<i32: 1>} : vector<1x128xi32>
    %c32_i32 = arith.constant 32 : i32
    %31 = vector.broadcast %c32_i32 : i32 to vector<1x128xi32>
    %32 = arith.cmpi slt, %30, %31 : vector<1x128xi32>
    %33 = arith.extui %32 : vector<1x128xi1> to vector<1x128xi32>
    %34 = arith.sitofp %33 : vector<1x128xi32> to vector<1x128xf32>
    %35 = vector.broadcast %34 : vector<1x128xf32> to vector<8x128xf32>
    %36 = arith.mulf %29, %35 : vector<8x128xf32>
    %37 = arith.mulf %36, %36 : vector<8x128xf32>
    %cst_21 = arith.constant dense<0.000000e+00> : vector<8xf32>
    %38 = vector.multi_reduction <add>, %37, %cst_21 [1] : vector<8x128xf32> to vector<8xf32>
    %39 = vector.shape_cast %38 : vector<8xf32> to vector<8x1xf32>
    %cst_22 = arith.constant 3.125000e-02 : f32
    %40 = vector.broadcast %cst_22 : f32 to vector<8x1xf32>
    %41 = arith.mulf %39, %40 : vector<8x1xf32>
    %cst_23 = arith.constant 9.99999974E-6 : f32
    %42 = vector.broadcast %cst_23 : f32 to vector<8x1xf32>
    %43 = arith.addf %41, %42 : vector<8x1xf32>
    %44 = math.rsqrt %43 : vector<8x1xf32>
    %45 = vector.broadcast %44 : vector<8x1xf32> to vector<8x128xf32>
    %46 = arith.mulf %36, %45 : vector<8x128xf32>
    %c0_24 = arith.constant 0 : index
    %c0_25 = arith.constant 0 : index
    %47 = vector.load %arg6[%c0_24, %c0_25] : memref<1x128xf32, #tpu.memory_space<vmem>>, vector<1x128xf32>
    %48 = vector.broadcast %47 : vector<1x128xf32> to vector<8x128xf32>
    %49 = arith.mulf %46, %48 : vector<8x128xf32>
    %c0_26 = arith.constant 0 : index
    %c0_27 = arith.constant 0 : index
    %50 = vector.load %arg7[%c0_26, %c0_27] : memref<1x128xf32, #tpu.memory_space<vmem>>, vector<1x128xf32>
    %51 = vector.broadcast %50 : vector<1x128xf32> to vector<8x128xf32>
    %52 = arith.addf %49, %51 : vector<8x128xf32>
    %c0_28 = arith.constant 0 : index
    %c0_29 = arith.constant 0 : index
    %53 = vector.load %arg8[%c0_28, %c0_29] : memref<128x128xf32, #tpu.memory_space<vmem>>, vector<128x128xf32>
    %cst_30 = arith.constant dense<0.000000e+00> : vector<8x128xf32>
    %54 = tpu.matmul %52, %53, %cst_30 {dimension_numbers = #tpu.dot_dimension_numbers<[1], [0], [0], [1], [0, 0, 1, 1], [], []>} : vector<8x128xf32>, vector<128x128xf32>, vector<8x128xf32> -> vector<8x128xf32>
    %c0_31 = arith.constant 0 : index
    %c0_32 = arith.constant 0 : index
    %55 = vector.load %arg9[%c0_31, %c0_32] : memref<1x128xf32, #tpu.memory_space<vmem>>, vector<1x128xf32>
    %56 = vector.broadcast %55 : vector<1x128xf32> to vector<8x128xf32>
    %57 = arith.addf %54, %56 : vector<8x128xf32>
    %c0_33 = arith.constant 0 : index
    %c0_34 = arith.constant 0 : index
    %58 = vector.load %arg12[%c0_33, %c0_34] : memref<8x128xf32, #tpu.memory_space<vmem>>, vector<8x128xf32>
    tpu.vector_store %arg12[%c0_33, %c0_34], %57 {strides = array<i32>} : memref<8x128xf32, #tpu.memory_space<vmem>>, vector<8x128xf32>,
    %c0_35 = arith.constant 0 : index
    %c0_36 = arith.constant 0 : index
    %59 = vector.load %arg10[%c0_35, %c0_36] : memref<128x128xf32, #tpu.memory_space<vmem>>, vector<128x128xf32>
    %cst_37 = arith.constant dense<0.000000e+00> : vector<8x128xf32>
    %60 = tpu.matmul %52, %59, %cst_37 {dimension_numbers = #tpu.dot_dimension_numbers<[1], [0], [0], [1], [0, 0, 1, 1], [], []>} : vector<8x128xf32>, vector<128x128xf32>, vector<8x128xf32> -> vector<8x128xf32>
    %c0_38 = arith.constant 0 : index
    %c0_39 = arith.constant 0 : index
    %61 = vector.load %arg11[%c0_38, %c0_39] : memref<1x128xf32, #tpu.memory_space<vmem>>, vector<1x128xf32>
    %62 = vector.broadcast %61 : vector<1x128xf32> to vector<8x128xf32>
    %63 = arith.addf %60, %62 : vector<8x128xf32>
    %64 = math.tanh %63 : vector<8x128xf32>
    %c0_40 = arith.constant 0 : index
    %c0_41 = arith.constant 0 : index
    %65 = vector.load %arg13[%c0_40, %c0_41] : memref<8x128xf32, #tpu.memory_space<vmem>>, vector<8x128xf32>
    tpu.vector_store %arg13[%c0_40, %c0_41], %64 {strides = array<i32>} : memref<8x128xf32, #tpu.memory_space<vmem>>, vector<8x128xf32>,
    return
  }
  func.func @transform_0(%arg0: i32) -> (i32, i32, i32) {
    %c0_i32 = arith.constant 0 : i32
    %c0_i32_0 = arith.constant 0 : i32
    %c0_i32_1 = arith.constant 0 : i32
    return %arg0, %c0_i32, %c0_i32_0 : i32, i32, i32
  }
  func.func @transform_1(%arg0: i32) -> (i32, i32, i32) {
    %c0_i32 = arith.constant 0 : i32
    %c0_i32_0 = arith.constant 0 : i32
    %c0_i32_1 = arith.constant 0 : i32
    return %arg0, %c0_i32, %c0_i32_0 : i32, i32, i32
  }
  func.func @transform_2(%arg0: i32) -> (i32, i32) {
    %c0_i32 = arith.constant 0 : i32
    %c0_i32_0 = arith.constant 0 : i32
    %c0_i32_1 = arith.constant 0 : i32
    return %c0_i32, %c0_i32_0 : i32, i32
  }
  func.func @transform_3(%arg0: i32) -> (i32, i32) {
    %c0_i32 = arith.constant 0 : i32
    %c0_i32_0 = arith.constant 0 : i32
    %c0_i32_1 = arith.constant 0 : i32
    return %c0_i32, %c0_i32_0 : i32, i32
  }
  func.func @transform_4(%arg0: i32) -> (i32, i32) {
    %c0_i32 = arith.constant 0 : i32
    %c0_i32_0 = arith.constant 0 : i32
    %c0_i32_1 = arith.constant 0 : i32
    return %c0_i32, %c0_i32_0 : i32, i32
  }
  func.func @transform_5(%arg0: i32) -> (i32, i32) {
    %c0_i32 = arith.constant 0 : i32
    %c0_i32_0 = arith.constant 0 : i32
    %c0_i32_1 = arith.constant 0 : i32
    return %c0_i32, %c0_i32_0 : i32, i32
  }
  func.func @transform_6(%arg0: i32) -> (i32, i32) {
    %c0_i32 = arith.constant 0 : i32
    %c0_i32_0 = arith.constant 0 : i32
    %c0_i32_1 = arith.constant 0 : i32
    return %c0_i32, %c0_i32_0 : i32, i32
  }
  func.func @transform_7(%arg0: i32) -> (i32, i32) {
    %c0_i32 = arith.constant 0 : i32
    %c0_i32_0 = arith.constant 0 : i32
    %c0_i32_1 = arith.constant 0 : i32
    return %c0_i32, %c0_i32_0 : i32, i32
  }
  func.func @transform_8(%arg0: i32) -> (i32, i32) {
    %c0_i32 = arith.constant 0 : i32
    %c0_i32_0 = arith.constant 0 : i32
    %c0_i32_1 = arith.constant 0 : i32
    return %c0_i32, %c0_i32_0 : i32, i32
  }
  func.func @transform_9(%arg0: i32) -> (i32, i32) {
    %c0_i32 = arith.constant 0 : i32
    %c0_i32_0 = arith.constant 0 : i32
    %c0_i32_1 = arith.constant 0 : i32
    return %c0_i32, %c0_i32_0 : i32, i32
  }
  func.func @transform_10(%arg0: i32) -> (i32, i32) {
    %c0_i32 = arith.constant 0 : i32
    %c0_i32_0 = arith.constant 0 : i32
    %c0_i32_1 = arith.constant 0 : i32
    return %c0_i32, %c0_i32_0 : i32, i32
  }
  func.func @transform_11(%arg0: i32) -> (i32, i32) {
    %c0_i32 = arith.constant 0 : i32
    %c0_i32_0 = arith.constant 0 : i32
    return %arg0, %c0_i32 : i32, i32
  }
  func.func @transform_12(%arg0: i32) -> (i32, i32) {
    %c0_i32 = arith.constant 0 : i32
    %c0_i32_0 = arith.constant 0 : i32
    return %arg0, %c0_i32 : i32, i32
  }
}

module attributes {stable_mosaic.version = 11 : i64} {
  func.func @_head_kernel(%arg0: i32, %arg1: memref<8x64x32xf32, #tpu.memory_space<vmem>>, %arg2: memref<8x32x64xf32, #tpu.memory_space<vmem>>, %arg3: memref<32x128xf32, #tpu.memory_space<vmem>>, %arg4: memref<32x128xf32, #tpu.memory_space<vmem>>, %arg5: memref<1x128xf32, #tpu.memory_space<vmem>>, %arg6: memref<1x128xf32, #tpu.memory_space<vmem>>, %arg7: memref<1x128xf32, #tpu.memory_space<vmem>>, %arg8: memref<128x128xf32, #tpu.memory_space<vmem>>, %arg9: memref<1x128xf32, #tpu.memory_space<vmem>>, %arg10: memref<128x128xf32, #tpu.memory_space<vmem>>, %arg11: memref<1x128xf32, #tpu.memory_space<vmem>>, %arg12: memref<8x128xf32, #tpu.memory_space<vmem>>, %arg13: memref<8x128xf32, #tpu.memory_space<vmem>>) attributes {dimension_semantics = [#tpu.dimension_semantics<parallel>], iteration_bounds = array<i64: 1>, scalar_prefetch = 0 : i64, scratch_operands = 0 : i64, tpu.core_type = #tpu.core_type<tc>, window_params = [{transform_indices = @transform_0, window_bounds = array<i64: 8, 64, 32>}, {transform_indices = @transform_1, window_bounds = array<i64: 8, 32, 64>}, {pipeline_mode = #tpu.pipeline_mode<synchronous>, transform_indices = @transform_2, window_bounds = array<i64: 32, 128>}, {pipeline_mode = #tpu.pipeline_mode<synchronous>, transform_indices = @transform_3, window_bounds = array<i64: 32, 128>}, {pipeline_mode = #tpu.pipeline_mode<synchronous>, transform_indices = @transform_4, window_bounds = array<i64: 1, 128>}, {pipeline_mode = #tpu.pipeline_mode<synchronous>, transform_indices = @transform_5, window_bounds = array<i64: 1, 128>}, {pipeline_mode = #tpu.pipeline_mode<synchronous>, transform_indices = @transform_6, window_bounds = array<i64: 1, 128>}, {pipeline_mode = #tpu.pipeline_mode<synchronous>, transform_indices = @transform_7, window_bounds = array<i64: 128, 128>}, {pipeline_mode = #tpu.pipeline_mode<synchronous>, transform_indices = @transform_8, window_bounds = array<i64: 1, 128>}, {pipeline_mode = #tpu.pipeline_mode<synchronous>, transform_indices = @transform_9, window_bounds = array<i64: 128, 128>}, {pipeline_mode = #tpu.pipeline_mode<synchronous>, transform_indices = @transform_10, window_bounds = array<i64: 1, 128>}, {transform_indices = @transform_11, window_bounds = array<i64: 8, 128>}, {transform_indices = @transform_12, window_bounds = array<i64: 8, 128>}]} {
    %c0 = arith.constant 0 : index
    %c0_0 = arith.constant 0 : index
    %c0_1 = arith.constant 0 : index
    %0 = vector.load %arg1[%c0, %c0_0, %c0_1] : memref<8x64x32xf32, #tpu.memory_space<vmem>>, vector<8x64x32xf32>
    %cst = arith.constant dense<0.000000e+00> : vector<8x32xf32>
    %1 = vector.multi_reduction <add>, %0, %cst [1] : vector<8x64x32xf32> to vector<8x32xf32>
    %cst_2 = arith.constant 1.562500e-02 : f32
    %2 = vector.broadcast %cst_2 : f32 to vector<8x32xf32>
    %3 = arith.mulf %1, %2 : vector<8x32xf32>
    %c0_3 = arith.constant 0 : index
    %c0_4 = arith.constant 0 : index
    %c0_5 = arith.constant 0 : index
    %4 = vector.load %arg2[%c0_3, %c0_4, %c0_5] : memref<8x32x64xf32, #tpu.memory_space<vmem>>, vector<8x32x64xf32>
    %cst_6 = arith.constant dense<0.000000e+00> : vector<8x32xf32>
    %5 = vector.multi_reduction <add>, %4, %cst_6 [2] : vector<8x32x64xf32> to vector<8x32xf32>
    %cst_7 = arith.constant 1.562500e-02 : f32
    %6 = vector.broadcast %cst_7 : f32 to vector<8x32xf32>
    %7 = arith.mulf %5, %6 : vector<8x32xf32>
    %c0_8 = arith.constant 0 : index
    %c0_9 = arith.constant 0 : index
    %8 = vector.load %arg3[%c0_8, %c0_9] : memref<32x128xf32, #tpu.memory_space<vmem>>, vector<32x128xf32>
    %cst_10 = arith.constant dense<0.000000e+00> : vector<8x128xf32>
    %9 = tpu.matmul %3, %8, %cst_10 {dimension_numbers = #tpu.dot_dimension_numbers<[1], [0], [0], [1], [0, 0, 1, 1], [], []>} : vector<8x32xf32>, vector<32x128xf32>, vector<8x128xf32> -> vector<8x128xf32>
    %c0_11 = arith.constant 0 : index
    %c0_12 = arith.constant 0 : index
    %10 = vector.load %arg4[%c0_11, %c0_12] : memref<32x128xf32, #tpu.memory_space<vmem>>, vector<32x128xf32>
    %cst_13 = arith.constant dense<0.000000e+00> : vector<8x128xf32>
    %11 = tpu.matmul %7, %10, %cst_13 {dimension_numbers = #tpu.dot_dimension_numbers<[1], [0], [0], [1], [0, 0, 1, 1], [], []>} : vector<8x32xf32>, vector<32x128xf32>, vector<8x128xf32> -> vector<8x128xf32>
    %12 = arith.addf %9, %11 : vector<8x128xf32>
    %c0_14 = arith.constant 0 : index
    %c0_15 = arith.constant 0 : index
    %13 = vector.load %arg5[%c0_14, %c0_15] : memref<1x128xf32, #tpu.memory_space<vmem>>, vector<1x128xf32>
    %14 = vector.broadcast %13 : vector<1x128xf32> to vector<8x128xf32>
    %15 = arith.addf %12, %14 : vector<8x128xf32>
    %cst_16 = arith.constant 5.000000e-01 : f32
    %16 = vector.broadcast %cst_16 : f32 to vector<8x128xf32>
    %17 = arith.mulf %16, %15 : vector<8x128xf32>
    %cst_17 = arith.constant 0.707106769 : f32
    %18 = vector.broadcast %cst_17 : f32 to vector<8x128xf32>
    %19 = arith.mulf %15, %18 : vector<8x128xf32>
    %20 = math.erf %19 : vector<8x128xf32>
    %cst_18 = arith.constant 1.000000e+00 : f32
    %21 = vector.broadcast %cst_18 : f32 to vector<8x128xf32>
    %22 = arith.addf %21, %20 : vector<8x128xf32>
    %23 = arith.mulf %17, %22 : vector<8x128xf32>
    %cst_19 = arith.constant dense<0.000000e+00> : vector<8xf32>
    %24 = vector.multi_reduction <add>, %23, %cst_19 [1] : vector<8x128xf32> to vector<8xf32>
    %25 = vector.shape_cast %24 : vector<8xf32> to vector<8x1xf32>
    %cst_20 = arith.constant 3.125000e-02 : f32
    %26 = vector.broadcast %cst_20 : f32 to vector<8x1xf32>
    %27 = arith.mulf %25, %26 : vector<8x1xf32>
    %28 = vector.broadcast %27 : vector<8x1xf32> to vector<8x128xf32>
    %29 = arith.subf %23, %28 : vector<8x128xf32>
    %30 = tpu.iota {dimensions = array<i32: 1>} : vector<1x128xi32>
    %c32_i32 = arith.constant 32 : i32
    %31 = vector.broadcast %c32_i32 : i32 to vector<1x128xi32>
    %32 = arith.cmpi slt, %30, %31 : vector<1x128xi32>
    %33 = arith.extui %32 : vector<1x128xi1> to vector<1x128xi32>
    %34 = arith.sitofp %33 : vector<1x128xi32> to vector<1x128xf32>
    %35 = vector.broadcast %34 : vector<1x128xf32> to vector<8x128xf32>
    %36 = arith.mulf %29, %35 : vector<8x128xf32>
    %37 = arith.mulf %36, %36 : vector<8x128xf32>
    %cst_21 = arith.constant dense<0.000000e+00> : vector<8xf32>
    %38 = vector.multi_reduction <add>, %37, %cst_21 [1] : vector<8x128xf32> to vector<8xf32>
    %39 = vector.shape_cast %38 : vector<8xf32> to vector<8x1xf32>
    %cst_22 = arith.constant 3.125000e-02 : f32
    %40 = vector.broadcast %cst_22 : f32 to vector<8x1xf32>
    %41 = arith.mulf %39, %40 : vector<8x1xf32>
    %cst_23 = arith.constant 9.99999974E-6 : f32
    %42 = vector.broadcast %cst_23 : f32 to vector<8x1xf32>
    %43 = arith.addf %41, %42 : vector<8x1xf32>
    %44 = math.rsqrt %43 : vector<8x1xf32>
    %45 = vector.broadcast %44 : vector<8x1xf32> to vector<8x128xf32>
    %46 = arith.mulf %36, %45 : vector<8x128xf32>
    %c0_24 = arith.constant 0 : index
    %c0_25 = arith.constant 0 : index
    %47 = vector.load %arg6[%c0_24, %c0_25] : memref<1x128xf32, #tpu.memory_space<vmem>>, vector<1x128xf32>
    %48 = vector.broadcast %47 : vector<1x128xf32> to vector<8x128xf32>
    %49 = arith.mulf %46, %48 : vector<8x128xf32>
    %c0_26 = arith.constant 0 : index
    %c0_27 = arith.constant 0 : index
    %50 = vector.load %arg7[%c0_26, %c0_27] : memref<1x128xf32, #tpu.memory_space<vmem>>, vector<1x128xf32>
    %51 = vector.broadcast %50 : vector<1x128xf32> to vector<8x128xf32>
    %52 = arith.addf %49, %51 : vector<8x128xf32>
    %c0_28 = arith.constant 0 : index
    %c0_29 = arith.constant 0 : index
    %53 = vector.load %arg8[%c0_28, %c0_29] : memref<128x128xf32, #tpu.memory_space<vmem>>, vector<128x128xf32>
    %cst_30 = arith.constant dense<0.000000e+00> : vector<8x128xf32>
    %54 = tpu.matmul %52, %53, %cst_30 {dimension_numbers = #tpu.dot_dimension_numbers<[1], [0], [0], [1], [0, 0, 1, 1], [], []>} : vector<8x128xf32>, vector<128x128xf32>, vector<8x128xf32> -> vector<8x128xf32>
    %c0_31 = arith.constant 0 : index
    %c0_32 = arith.constant 0 : index
    %55 = vector.load %arg9[%c0_31, %c0_32] : memref<1x128xf32, #tpu.memory_space<vmem>>, vector<1x128xf32>
    %56 = vector.broadcast %55 : vector<1x128xf32> to vector<8x128xf32>
    %57 = arith.addf %54, %56 : vector<8x128xf32>
    %c0_33 = arith.constant 0 : index
    %c0_34 = arith.constant 0 : index
    %58 = vector.load %arg12[%c0_33, %c0_34] : memref<8x128xf32, #tpu.memory_space<vmem>>, vector<8x128xf32>
    tpu.vector_store %arg12[%c0_33, %c0_34], %57 {strides = array<i32>} : memref<8x128xf32, #tpu.memory_space<vmem>>, vector<8x128xf32>,
    %c0_35 = arith.constant 0 : index
    %c0_36 = arith.constant 0 : index
    %59 = vector.load %arg10[%c0_35, %c0_36] : memref<128x128xf32, #tpu.memory_space<vmem>>, vector<128x128xf32>
    %cst_37 = arith.constant dense<0.000000e+00> : vector<8x128xf32>
    %60 = tpu.matmul %52, %59, %cst_37 {dimension_numbers = #tpu.dot_dimension_numbers<[1], [0], [0], [1], [0, 0, 1, 1], [], []>} : vector<8x128xf32>, vector<128x128xf32>, vector<8x128xf32> -> vector<8x128xf32>
    %c0_38 = arith.constant 0 : index
    %c0_39 = arith.constant 0 : index
    %61 = vector.load %arg11[%c0_38, %c0_39] : memref<1x128xf32, #tpu.memory_space<vmem>>, vector<1x128xf32>
    %62 = vector.broadcast %61 : vector<1x128xf32> to vector<8x128xf32>
    %63 = arith.addf %60, %62 : vector<8x128xf32>
    %64 = math.tanh %63 : vector<8x128xf32>
    %c0_40 = arith.constant 0 : index
    %c0_41 = arith.constant 0 : index
    %65 = vector.load %arg13[%c0_40, %c0_41] : memref<8x128xf32, #tpu.memory_space<vmem>>, vector<8x128xf32>
    tpu.vector_store %arg13[%c0_40, %c0_41], %64 {strides = array<i32>} : memref<8x128xf32, #tpu.memory_space<vmem>>, vector<8x128xf32>,
    return
  }
  func.func @transform_0(%arg0: i32) -> (i32, i32, i32) {
    %c0_i32 = arith.constant 0 : i32
    %c0_i32_0 = arith.constant 0 : i32
    %c0_i32_1 = arith.constant 0 : i32
    return %arg0, %c0_i32, %c0_i32_0 : i32, i32, i32
  }
  func.func @transform_1(%arg0: i32) -> (i32, i32, i32) {
    %c0_i32 = arith.constant 0 : i32
    %c0_i32_0 = arith.constant 0 : i32
    %c0_i32_1 = arith.constant 0 : i32
    return %arg0, %c0_i32, %c0_i32_0 : i32, i32, i32
  }
  func.func @transform_2(%arg0: i32) -> (i32, i32) {
    %c0_i32 = arith.constant 0 : i32
    %c0_i32_0 = arith.constant 0 : i32
    %c0_i32_1 = arith.constant 0 : i32
    return %c0_i32, %c0_i32_0 : i32, i32
  }
  func.func @transform_3(%arg0: i32) -> (i32, i32) {
    %c0_i32 = arith.constant 0 : i32
    %c0_i32_0 = arith.constant 0 : i32
    %c0_i32_1 = arith.constant 0 : i32
    return %c0_i32, %c0_i32_0 : i32, i32
  }
  func.func @transform_4(%arg0: i32) -> (i32, i32) {
    %c0_i32 = arith.constant 0 : i32
    %c0_i32_0 = arith.constant 0 : i32
    %c0_i32_1 = arith.constant 0 : i32
    return %c0_i32, %c0_i32_0 : i32, i32
  }
  func.func @transform_5(%arg0: i32) -> (i32, i32) {
    %c0_i32 = arith.constant 0 : i32
    %c0_i32_0 = arith.constant 0 : i32
    %c0_i32_1 = arith.constant 0 : i32
    return %c0_i32, %c0_i32_0 : i32, i32
  }
  func.func @transform_6(%arg0: i32) -> (i32, i32) {
    %c0_i32 = arith.constant 0 : i32
    %c0_i32_0 = arith.constant 0 : i32
    %c0_i32_1 = arith.constant 0 : i32
    return %c0_i32, %c0_i32_0 : i32, i32
  }
  func.func @transform_7(%arg0: i32) -> (i32, i32) {
    %c0_i32 = arith.constant 0 : i32
    %c0_i32_0 = arith.constant 0 : i32
    %c0_i32_1 = arith.constant 0 : i32
    return %c0_i32, %c0_i32_0 : i32, i32
  }
  func.func @transform_8(%arg0: i32) -> (i32, i32) {
    %c0_i32 = arith.constant 0 : i32
    %c0_i32_0 = arith.constant 0 : i32
    %c0_i32_1 = arith.constant 0 : i32
    return %c0_i32, %c0_i32_0 : i32, i32
  }
  func.func @transform_9(%arg0: i32) -> (i32, i32) {
    %c0_i32 = arith.constant 0 : i32
    %c0_i32_0 = arith.constant 0 : i32
    %c0_i32_1 = arith.constant 0 : i32
    return %c0_i32, %c0_i32_0 : i32, i32
  }
  func.func @transform_10(%arg0: i32) -> (i32, i32) {
    %c0_i32 = arith.constant 0 : i32
    %c0_i32_0 = arith.constant 0 : i32
    %c0_i32_1 = arith.constant 0 : i32
    return %c0_i32, %c0_i32_0 : i32, i32
  }
  func.func @transform_11(%arg0: i32) -> (i32, i32) {
    %c0_i32 = arith.constant 0 : i32
    %c0_i32_0 = arith.constant 0 : i32
    return %arg0, %c0_i32 : i32, i32
  }
  func.func @transform_12(%arg0: i32) -> (i32, i32) {
    %c0_i32 = arith.constant 0 : i32
    %c0_i32_0 = arith.constant 0 : i32
    return %arg0, %c0_i32 : i32, i32
  }
}

</mosaic_0001>

<llo_original>
// kernel: tpu_custom_call.1
$region0: #{tpu_custom_call.1}
  #allocation0 [shape = 'u32[]', space=smem, size = 0x4, offset = 0x4, fixed_abs, tag = 'smem constant byte address 0x4 - core index']
  #allocation1 [shape = 'u32[144,128]{1,0:T(1,128)}', space=vmem, size = 0x12000, scoped, tag = 'internal scratch']
  %s0 = inlined_call_operand.vmem [shape: f32[8,64,32], index: 0, kind: input, shape index: {}]
  %s1 = inlined_call_operand.vmem [shape: f32[8,32,64], index: 1, kind: input, shape index: {}]
  %s2 = inlined_call_operand.vmem [shape: f32[32,128], index: 2, kind: input, shape index: {}]
  %s3 = inlined_call_operand.vmem [shape: f32[32,128], index: 3, kind: input, shape index: {}]
  %s4 = inlined_call_operand.vmem [shape: f32[1,128], index: 4, kind: input, shape index: {}]
  %s5 = inlined_call_operand.vmem [shape: f32[1,128], index: 5, kind: input, shape index: {}]
  %s6 = inlined_call_operand.vmem [shape: f32[1,128], index: 6, kind: input, shape index: {}]
  %s7 = inlined_call_operand.vmem [shape: f32[128,128], index: 7, kind: input, shape index: {}]
  %s8 = inlined_call_operand.vmem [shape: f32[1,128], index: 8, kind: input, shape index: {}]
  %s9 = inlined_call_operand.vmem [shape: f32[128,128], index: 9, kind: input, shape index: {}]
  %s10 = inlined_call_operand.vmem [shape: f32[1,128], index: 10, kind: input, shape index: {}]
  %s11 = inlined_call_operand.hbm [shape: f32[8,128], index: 11, kind: output, shape index: {0}]
  %s12 = inlined_call_operand.hbm [shape: f32[8,128], index: 12, kind: output, shape index: {1}]
  %13 = xla_tuple %s11, %s12
  %s14 = sld [smem:[#allocation0]]
  $region62: #{tpu_custom_call.1} parent=0
    _
  %s16 = ssub.s32 1, %s14
  %s17 = scalar_select 0, %s16, %s14
  $region1: #{tpu_custom_call.1} parent=0
    #allocation2 [shape = 'u8[4096]{0}', space=vmem, size = 0x1000, scoped, tag = 'output window, operand 0, single buffered']
    #allocation3 [shape = 's32[1]{0}', space=sflag, size = 0x4, scoped, tag = 'scoped memory for tpu_custom_call.1']
    #allocation4 [shape = 'u8[4096]{0}', space=vmem, size = 0x1000, scoped, tag = 'output window, operand 1, single buffered']
    #allocation5 [shape = 's32[1]{0}', space=sflag, size = 0x4, scoped, tag = 'scoped memory for tpu_custom_call.1']
    %18 = vsyncpa [#allocation3], 0
    %19 = vsyncpa [#allocation5], 0
    // Predicated region
    $region2: #{tpu_custom_call.1} parent=1 // pred_check
      _
    $region3: #{tpu_custom_call.1} parent=1 // pred_check_branch
      %21 = sbr.rel (0) target = $region5
    $region4: #{tpu_custom_call.1} parent=1 // pred_region
      _
    $region5: #{tpu_custom_call.1} parent=1 // pred_fallthru
      _
    // Predicated region
    $region6: #{tpu_custom_call.1} parent=1 // pred_check
      _
    $region7: #{tpu_custom_call.1} parent=1 // pred_check_branch
      %23 = sbr.rel (0) target = $region9
    $region8: #{tpu_custom_call.1} parent=1 // pred_region
      _
    $region9: #{tpu_custom_call.1} parent=1 // pred_fallthru
      _
    // Predicated region
    $region10: #{tpu_custom_call.1} parent=1 // pred_check
      _
    $region11: #{tpu_custom_call.1} parent=1 // pred_check_branch
      %25 = sbr.rel (0) target = $region13
    $region12: #{tpu_custom_call.1} parent=1 // pred_region
      _
    $region13: #{tpu_custom_call.1} parent=1 // pred_fallthru
      _
    // Predicated region
    $region14: #{tpu_custom_call.1} parent=1 // pred_check
      _
    $region15: #{tpu_custom_call.1} parent=1 // pred_check_branch
      %27 = sbr.rel (0) target = $region17
    $region16: #{tpu_custom_call.1} parent=1 // pred_region
      _
    $region17: #{tpu_custom_call.1} parent=1 // pred_fallthru
      _
    // Predicated region
    $region18: #{tpu_custom_call.1} parent=1 // pred_check
      _
    $region19: #{tpu_custom_call.1} parent=1 // pred_check_branch
      %29 = sbr.rel (0) target = $region21
    $region20: #{tpu_custom_call.1} parent=1 // pred_region
      _
    $region21: #{tpu_custom_call.1} parent=1 // pred_fallthru
      _
    // Predicated region
    $region22: #{tpu_custom_call.1} parent=1 // pred_check
      _
    $region23: #{tpu_custom_call.1} parent=1 // pred_check_branch
      %31 = sbr.rel (0) target = $region25
    $region24: #{tpu_custom_call.1} parent=1 // pred_region
      _
    $region25: #{tpu_custom_call.1} parent=1 // pred_fallthru
      _
    // Predicated region
    $region26: #{tpu_custom_call.1} parent=1 // pred_check
      _
    $region27: #{tpu_custom_call.1} parent=1 // pred_check_branch
      %33 = sbr.rel (0) target = $region29
    $region28: #{tpu_custom_call.1} parent=1 // pred_region
      _
    $region29: #{tpu_custom_call.1} parent=1 // pred_fallthru
      _
    // Predicated region
    $region30: #{tpu_custom_call.1} parent=1 // pred_check
      _
    $region31: #{tpu_custom_call.1} parent=1 // pred_check_branch
      %35 = sbr.rel (0) target = $region33
    $region32: #{tpu_custom_call.1} parent=1 // pred_region
      _
    $region33: #{tpu_custom_call.1} parent=1 // pred_fallthru
      _
    // Predicated region
    $region34: #{tpu_custom_call.1} parent=1 // pred_check
      _
    $region35: #{tpu_custom_call.1} parent=1 // pred_check_branch
      %37 = sbr.rel (0) target = $region37
    $region36: #{tpu_custom_call.1} parent=1 // pred_region
      _
    $region37: #{tpu_custom_call.1} parent=1 // pred_fallthru
      _
    // Predicated region
    $region38: #{tpu_custom_call.1} parent=1 // pred_check
      _
    $region39: #{tpu_custom_call.1} parent=1 // pred_check_branch
      %39 = sbr.rel (0) target = $region41
    $region40: #{tpu_custom_call.1} parent=1 // pred_region
      _
    $region41: #{tpu_custom_call.1} parent=1 // pred_fallthru
      _
    // Predicated region
    $region42: #{tpu_custom_call.1} parent=1 // pred_check
      _
    $region43: #{tpu_custom_call.1} parent=1 // pred_check_branch
      %41 = sbr.rel (0) target = $region45
    $region44: #{tpu_custom_call.1} parent=1 // pred_region
      _
    $region45: #{tpu_custom_call.1} parent=1 // pred_fallthru
      _
    %v42 = vld [vmem:[%s0] sm:$0xff]
    %v43 = vld [vmem:[%s0 + $0x8] sm:$0xff]
    %v44 = vld [vmem:[%s0 + $0x10] sm:$0xff]
    %v45 = vld [vmem:[%s0 + $0x18] sm:$0xff]
    %v46 = vld [vmem:[%s0 + $0x20] sm:$0xff]
    %v47 = vld [vmem:[%s0 + $0x28] sm:$0xff]
    %v48 = vld [vmem:[%s0 + $0x30] sm:$0xff]
    %v49 = vld [vmem:[%s0 + $0x38] sm:$0xff]
    %v50 = vld [vmem:[%s0 + $0x40] sm:$0xff]
    %v51 = vld [vmem:[%s0 + $0x48] sm:$0xff]
    %v52 = vld [vmem:[%s0 + $0x50] sm:$0xff]
    %v53 = vld [vmem:[%s0 + $0x58] sm:$0xff]
    %v54 = vld [vmem:[%s0 + $0x60] sm:$0xff]
    %v55 = vld [vmem:[%s0 + $0x68] sm:$0xff]
    %v56 = vld [vmem:[%s0 + $0x70] sm:$0xff]
    %v57 = vld [vmem:[%s0 + $0x78] sm:$0xff]
    %v58 = vld [vmem:[%s0 + $0x80] sm:$0xff]
    %v59 = vld [vmem:[%s0 + $0x88] sm:$0xff]
    %v60 = vld [vmem:[%s0 + $0x90] sm:$0xff]
    %v61 = vld [vmem:[%s0 + $0x98] sm:$0xff]
    %v62 = vld [vmem:[%s0 + $0xa0] sm:$0xff]
    %v63 = vld [vmem:[%s0 + $0xa8] sm:$0xff]
    %v64 = vld [vmem:[%s0 + $0xb0] sm:$0xff]
    %v65 = vld [vmem:[%s0 + $0xb8] sm:$0xff]
    %v66 = vld [vmem:[%s0 + $0xc0] sm:$0xff]
    %v67 = vld [vmem:[%s0 + $0xc8] sm:$0xff]
    %v68 = vld [vmem:[%s0 + $0xd0] sm:$0xff]
    %v69 = vld [vmem:[%s0 + $0xd8] sm:$0xff]
    %v70 = vld [vmem:[%s0 + $0xe0] sm:$0xff]
    %v71 = vld [vmem:[%s0 + $0xe8] sm:$0xff]
    %v72 = vld [vmem:[%s0 + $0xf0] sm:$0xff]
    %v73 = vld [vmem:[%s0 + $0xf8] sm:$0xff]
    %v74 = vld [vmem:[%s0 + $0x100] sm:$0xff]
    %v75 = vld [vmem:[%s0 + $0x108] sm:$0xff]
    %v76 = vld [vmem:[%s0 + $0x110] sm:$0xff]
    %v77 = vld [vmem:[%s0 + $0x118] sm:$0xff]
    %v78 = vld [vmem:[%s0 + $0x120] sm:$0xff]
    %v79 = vld [vmem:[%s0 + $0x128] sm:$0xff]
    %v80 = vld [vmem:[%s0 + $0x130] sm:$0xff]
    %v81 = vld [vmem:[%s0 + $0x138] sm:$0xff]
    %v82 = vld [vmem:[%s0 + $0x140] sm:$0xff]
    %v83 = vld [vmem:[%s0 + $0x148] sm:$0xff]
    %v84 = vld [vmem:[%s0 + $0x150] sm:$0xff]
    %v85 = vld [vmem:[%s0 + $0x158] sm:$0xff]
    %v86 = vld [vmem:[%s0 + $0x160] sm:$0xff]
    %v87 = vld [vmem:[%s0 + $0x168] sm:$0xff]
    %v88 = vld [vmem:[%s0 + $0x170] sm:$0xff]
    %v89 = vld [vmem:[%s0 + $0x178] sm:$0xff]
    %v90 = vld [vmem:[%s0 + $0x180] sm:$0xff]
    %v91 = vld [vmem:[%s0 + $0x188] sm:$0xff]
    %v92 = vld [vmem:[%s0 + $0x190] sm:$0xff]
    %v93 = vld [vmem:[%s0 + $0x198] sm:$0xff]
    %v94 = vld [vmem:[%s0 + $0x1a0] sm:$0xff]
    %v95 = vld [vmem:[%s0 + $0x1a8] sm:$0xff]
    %v96 = vld [vmem:[%s0 + $0x1b0] sm:$0xff]
    %v97 = vld [vmem:[%s0 + $0x1b8] sm:$0xff]
    %v98 = vld [vmem:[%s0 + $0x1c0] sm:$0xff]
    %v99 = vld [vmem:[%s0 + $0x1c8] sm:$0xff]
    %v100 = vld [vmem:[%s0 + $0x1d0] sm:$0xff]
    %v101 = vld [vmem:[%s0 + $0x1d8] sm:$0xff]
    %v102 = vld [vmem:[%s0 + $0x1e0] sm:$0xff]
    %v103 = vld [vmem:[%s0 + $0x1e8] sm:$0xff]
    %v104 = vld [vmem:[%s0 + $0x1f0] sm:$0xff]
    %v105 = vld [vmem:[%s0 + $0x1f8] sm:$0xff]
    %vm106 = vcmask 261120
    %v107 = vsel %vm106, %v42, 0.0
    %v108 = vsel %vm106, %v43, 0.0
    %v109 = vadd.f32 %v107, %v108
    %v110 = vsel %vm106, %v44, 0.0
    %v111 = vadd.f32 %v109, %v110
    %v112 = vsel %vm106, %v45, 0.0
    %v113 = vadd.f32 %v111, %v112
    %v114 = vsel %vm106, %v46, 0.0
    %v115 = vadd.f32 %v113, %v114
    %v116 = vsel %vm106, %v47, 0.0
    %v117 = vadd.f32 %v115, %v116
    %v118 = vsel %vm106, %v48, 0.0
    %v119 = vadd.f32 %v117, %v118
    %v120 = vsel %vm106, %v49, 0.0
    %v121 = vadd.f32 %v119, %v120
    %v122 = vrot.slane %v121, 4
    %v123 = vadd.f32 %v121, %v122
    %v124 = vrot.slane %v123, 2
    %v125 = vadd.f32 %v123, %v124
    %v126 = vrot.slane %v125, 1
    %v127 = vadd.f32 %v125, %v126
    %v128 = vsel %vm106, %v50, 0.0
    %v129 = vsel %vm106, %v51, 0.0
    %v130 = vadd.f32 %v128, %v129
    %v131 = vsel %vm106, %v52, 0.0
    %v132 = vadd.f32 %v130, %v131
    %v133 = vsel %vm106, %v53, 0.0
    %v134 = vadd.f32 %v132, %v133
    %v135 = vsel %vm106, %v54, 0.0
    %v136 = vadd.f32 %v134, %v135
    %v137 = vsel %vm106, %v55, 0.0
    %v138 = vadd.f32 %v136, %v137
    %v139 = vsel %vm106, %v56, 0.0
    %v140 = vadd.f32 %v138, %v139
    %v141 = vsel %vm106, %v57, 0.0
    %v142 = vadd.f32 %v140, %v141
    %v143 = vrot.slane %v142, 4
    %v144 = vadd.f32 %v142, %v143
    %v145 = vrot.slane %v144, 2
    %v146 = vadd.f32 %v144, %v145
    %v147 = vrot.slane %v146, 1
    %v148 = vadd.f32 %v146, %v147
    %v149 = vsel %vm106, %v58, 0.0
    %v150 = vsel %vm106, %v59, 0.0
    %v151 = vadd.f32 %v149, %v150
    %v152 = vsel %vm106, %v60, 0.0
    %v153 = vadd.f32 %v151, %v152
    %v154 = vsel %vm106, %v61, 0.0
    %v155 = vadd.f32 %v153, %v154
    %v156 = vsel %vm106, %v62, 0.0
    %v157 = vadd.f32 %v155, %v156
    %v158 = vsel %vm106, %v63, 0.0
    %v159 = vadd.f32 %v157, %v158
    %v160 = vsel %vm106, %v64, 0.0
    %v161 = vadd.f32 %v159, %v160
    %v162 = vsel %vm106, %v65, 0.0
    %v163 = vadd.f32 %v161, %v162
    %v164 = vrot.slane %v163, 4
    %v165 = vadd.f32 %v163, %v164
    %v166 = vrot.slane %v165, 2
    %v167 = vadd.f32 %v165, %v166
    %v168 = vrot.slane %v167, 1
    %v169 = vadd.f32 %v167, %v168
    %v170 = vsel %vm106, %v66, 0.0
    %v171 = vsel %vm106, %v67, 0.0
    %v172 = vadd.f32 %v170, %v171
    %v173 = vsel %vm106, %v68, 0.0
    %v174 = vadd.f32 %v172, %v173
    %v175 = vsel %vm106, %v69, 0.0
    %v176 = vadd.f32 %v174, %v175
    %v177 = vsel %vm106, %v70, 0.0
    %v178 = vadd.f32 %v176, %v177
    %v179 = vsel %vm106, %v71, 0.0
    %v180 = vadd.f32 %v178, %v179
    %v181 = vsel %vm106, %v72, 0.0
    %v182 = vadd.f32 %v180, %v181
    %v183 = vsel %vm106, %v73, 0.0
    %v184 = vadd.f32 %v182, %v183
    %v185 = vrot.slane %v184, 4
    %v186 = vadd.f32 %v184, %v185
    %v187 = vrot.slane %v186, 2
    %v188 = vadd.f32 %v186, %v187
    %v189 = vrot.slane %v188, 1
    %v190 = vadd.f32 %v188, %v189
    %v191 = vsel %vm106, %v74, 0.0
    %v192 = vsel %vm106, %v75, 0.0
    %v193 = vadd.f32 %v191, %v192
    %v194 = vsel %vm106, %v76, 0.0
    %v195 = vadd.f32 %v193, %v194
    %v196 = vsel %vm106, %v77, 0.0
    %v197 = vadd.f32 %v195, %v196
    %v198 = vsel %vm106, %v78, 0.0
    %v199 = vadd.f32 %v197, %v198
    %v200 = vsel %vm106, %v79, 0.0
    %v201 = vadd.f32 %v199, %v200
    %v202 = vsel %vm106, %v80, 0.0
    %v203 = vadd.f32 %v201, %v202
    %v204 = vsel %vm106, %v81, 0.0
    %v205 = vadd.f32 %v203, %v204
    %v206 = vrot.slane %v205, 4
    %v207 = vadd.f32 %v205, %v206
    %v208 = vrot.slane %v207, 2
    %v209 = vadd.f32 %v207, %v208
    %v210 = vrot.slane %v209, 1
    %v211 = vadd.f32 %v209, %v210
    %v212 = vsel %vm106, %v82, 0.0
    %v213 = vsel %vm106, %v83, 0.0
    %v214 = vadd.f32 %v212, %v213
    %v215 = vsel %vm106, %v84, 0.0
    %v216 = vadd.f32 %v214, %v215
    %v217 = vsel %vm106, %v85, 0.0
    %v218 = vadd.f32 %v216, %v217
    %v219 = vsel %vm106, %v86, 0.0
    %v220 = vadd.f32 %v218, %v219
    %v221 = vsel %vm106, %v87, 0.0
    %v222 = vadd.f32 %v220, %v221
    %v223 = vsel %vm106, %v88, 0.0
    %v224 = vadd.f32 %v222, %v223
    %v225 = vsel %vm106, %v89, 0.0
    %v226 = vadd.f32 %v224, %v225
    %v227 = vrot.slane %v226, 4
    %v228 = vadd.f32 %v226, %v227
    %v229 = vrot.slane %v228, 2
    %v230 = vadd.f32 %v228, %v229
    %v231 = vrot.slane %v230, 1
    %v232 = vadd.f32 %v230, %v231
    %v233 = vsel %vm106, %v90, 0.0
    %v234 = vsel %vm106, %v91, 0.0
    %v235 = vadd.f32 %v233, %v234
    %v236 = vsel %vm106, %v92, 0.0
    %v237 = vadd.f32 %v235, %v236
    %v238 = vsel %vm106, %v93, 0.0
    %v239 = vadd.f32 %v237, %v238
    %v240 = vsel %vm106, %v94, 0.0
    %v241 = vadd.f32 %v239, %v240
    %v242 = vsel %vm106, %v95, 0.0
    %v243 = vadd.f32 %v241, %v242
    %v244 = vsel %vm106, %v96, 0.0
    %v245 = vadd.f32 %v243, %v244
    %v246 = vsel %vm106, %v97, 0.0
    %v247 = vadd.f32 %v245, %v246
    %v248 = vrot.slane %v247, 4
    %v249 = vadd.f32 %v247, %v248
    %v250 = vrot.slane %v249, 2
    %v251 = vadd.f32 %v249, %v250
    %v252 = vrot.slane %v251, 1
    %v253 = vadd.f32 %v251, %v252
    %v254 = vsel %vm106, %v98, 0.0
    %v255 = vsel %vm106, %v99, 0.0
    %v256 = vadd.f32 %v254, %v255
    %v257 = vsel %vm106, %v100, 0.0
    %v258 = vadd.f32 %v256, %v257
    %v259 = vsel %vm106, %v101, 0.0
    %v260 = vadd.f32 %v258, %v259
    %v261 = vsel %vm106, %v102, 0.0
    %v262 = vadd.f32 %v260, %v261
    %v263 = vsel %vm106, %v103, 0.0
    %v264 = vadd.f32 %v262, %v263
    %v265 = vsel %vm106, %v104, 0.0
    %v266 = vadd.f32 %v264, %v265
    %v267 = vsel %vm106, %v105, 0.0
    %v268 = vadd.f32 %v266, %v267
    %v269 = vrot.slane %v268, 4
    %v270 = vadd.f32 %v268, %v269
    %v271 = vrot.slane %v270, 2
    %v272 = vadd.f32 %v270, %v271
    %v273 = vrot.slane %v272, 1
    %v274 = vadd.f32 %v272, %v273
    %v275 = vmul.f32 %v127, 0.015625
    %v276 = vmul.f32 %v148, 0.015625
    %v277 = vmul.f32 %v169, 0.015625
    %v278 = vmul.f32 %v190, 0.015625
    %v279 = vmul.f32 %v211, 0.015625
    %v280 = vmul.f32 %v232, 0.015625
    %v281 = vmul.f32 %v253, 0.015625
    %v282 = vmul.f32 %v274, 0.015625
    %v283 = vld [vmem:[%s1] sm:$0xff]
    %v284 = vld [vmem:[%s1 + $0x8] sm:$0xff]
    %v285 = vld [vmem:[%s1 + $0x10] sm:$0xff]
    %v286 = vld [vmem:[%s1 + $0x18] sm:$0xff]
    %v287 = vld [vmem:[%s1 + $0x20] sm:$0xff]
    %v288 = vld [vmem:[%s1 + $0x28] sm:$0xff]
    %v289 = vld [vmem:[%s1 + $0x30] sm:$0xff]
    %v290 = vld [vmem:[%s1 + $0x38] sm:$0xff]
    %v291 = vld [vmem:[%s1 + $0x40] sm:$0xff]
    %v292 = vld [vmem:[%s1 + $0x48] sm:$0xff]
    %v293 = vld [vmem:[%s1 + $0x50] sm:$0xff]
    %v294 = vld [vmem:[%s1 + $0x58] sm:$0xff]
    %v295 = vld [vmem:[%s1 + $0x60] sm:$0xff]
    %v296 = vld [vmem:[%s1 + $0x68] sm:$0xff]
    %v297 = vld [vmem:[%s1 + $0x70] sm:$0xff]
    %v298 = vld [vmem:[%s1 + $0x78] sm:$0xff]
    %v299 = vld [vmem:[%s1 + $0x80] sm:$0xff]
    %v300 = vld [vmem:[%s1 + $0x88] sm:$0xff]
    %v301 = vld [vmem:[%s1 + $0x90] sm:$0xff]
    %v302 = vld [vmem:[%s1 + $0x98] sm:$0xff]
    %v303 = vld [vmem:[%s1 + $0xa0] sm:$0xff]
    %v304 = vld [vmem:[%s1 + $0xa8] sm:$0xff]
    %v305 = vld [vmem:[%s1 + $0xb0] sm:$0xff]
    %v306 = vld [vmem:[%s1 + $0xb8] sm:$0xff]
    %v307 = vld [vmem:[%s1 + $0xc0] sm:$0xff]
    %v308 = vld [vmem:[%s1 + $0xc8] sm:$0xff]
    %v309 = vld [vmem:[%s1 + $0xd0] sm:$0xff]
    %v310 = vld [vmem:[%s1 + $0xd8] sm:$0xff]
    %v311 = vld [vmem:[%s1 + $0xe0] sm:$0xff]
    %v312 = vld [vmem:[%s1 + $0xe8] sm:$0xff]
    %v313 = vld [vmem:[%s1 + $0xf0] sm:$0xff]
    %v314 = vld [vmem:[%s1 + $0xf8] sm:$0xff]
    %vm315 = vcmask 523264
    %v316 = vsel %vm315, %v283, 0.0
    %317 = vadd.xlane.f32.xlu0 %v316
    %v318 = vpop.xlane.xlu0 %317
    %v319 = vsel %vm315, %v284, 0.0
    %320 = vadd.xlane.f32.xlu0 %v319
    %v321 = vpop.xlane.xlu0 %320
    %v322 = vsel %vm315, %v285, 0.0
    %323 = vadd.xlane.f32.xlu0 %v322
    %v324 = vpop.xlane.xlu0 %323
    %v325 = vsel %vm315, %v286, 0.0
    %326 = vadd.xlane.f32.xlu0 %v325
    %v327 = vpop.xlane.xlu0 %326
    %v328 = vsel %vm315, %v287, 0.0
    %329 = vadd.xlane.f32.xlu0 %v328
    %v330 = vpop.xlane.xlu0 %329
    %v331 = vsel %vm315, %v288, 0.0
    %332 = vadd.xlane.f32.xlu0 %v331
    %v333 = vpop.xlane.xlu0 %332
    %v334 = vsel %vm315, %v289, 0.0
    %335 = vadd.xlane.f32.xlu0 %v334
    %v336 = vpop.xlane.xlu0 %335
    %v337 = vsel %vm315, %v290, 0.0
    %338 = vadd.xlane.f32.xlu0 %v337
    %v339 = vpop.xlane.xlu0 %338
    %v340 = vsel %vm315, %v291, 0.0
    %341 = vadd.xlane.f32.xlu0 %v340
    %v342 = vpop.xlane.xlu0 %341
    %v343 = vsel %vm315, %v292, 0.0
    %344 = vadd.xlane.f32.xlu0 %v343
    %v345 = vpop.xlane.xlu0 %344
    %v346 = vsel %vm315, %v293, 0.0
    %347 = vadd.xlane.f32.xlu0 %v346
    %v348 = vpop.xlane.xlu0 %347
    %v349 = vsel %vm315, %v294, 0.0
    %350 = vadd.xlane.f32.xlu0 %v349
    %v351 = vpop.xlane.xlu0 %350
    %v352 = vsel %vm315, %v295, 0.0
    %353 = vadd.xlane.f32.xlu0 %v352
    %v354 = vpop.xlane.xlu0 %353
    %v355 = vsel %vm315, %v296, 0.0
    %356 = vadd.xlane.f32.xlu0 %v355
    %v357 = vpop.xlane.xlu0 %356
    %v358 = vsel %vm315, %v297, 0.0
    %359 = vadd.xlane.f32.xlu0 %v358
    %v360 = vpop.xlane.xlu0 %359
    %v361 = vsel %vm315, %v298, 0.0
    %362 = vadd.xlane.f32.xlu0 %v361
    %v363 = vpop.xlane.xlu0 %362
    %v364 = vsel %vm315, %v299, 0.0
    %365 = vadd.xlane.f32.xlu0 %v364
    %v366 = vpop.xlane.xlu0 %365
    %v367 = vsel %vm315, %v300, 0.0
    %368 = vadd.xlane.f32.xlu0 %v367
    %v369 = vpop.xlane.xlu0 %368
    %v370 = vsel %vm315, %v301, 0.0
    %371 = vadd.xlane.f32.xlu0 %v370
    %v372 = vpop.xlane.xlu0 %371
    %v373 = vsel %vm315, %v302, 0.0
    %374 = vadd.xlane.f32.xlu0 %v373
    %v375 = vpop.xlane.xlu0 %374
    %v376 = vsel %vm315, %v303, 0.0
    %377 = vadd.xlane.f32.xlu0 %v376
    %v378 = vpop.xlane.xlu0 %377
    %v379 = vsel %vm315, %v304, 0.0
    %380 = vadd.xlane.f32.xlu0 %v379
    %v381 = vpop.xlane.xlu0 %380
    %v382 = vsel %vm315, %v305, 0.0
    %383 = vadd.xlane.f32.xlu0 %v382
    %v384 = vpop.xlane.xlu0 %383
    %v385 = vsel %vm315, %v306, 0.0
    %386 = vadd.xlane.f32.xlu0 %v385
    %v387 = vpop.xlane.xlu0 %386
    %v388 = vsel %vm315, %v307, 0.0
    %389 = vadd.xlane.f32.xlu0 %v388
    %v390 = vpop.xlane.xlu0 %389
    %v391 = vsel %vm315, %v308, 0.0
    %392 = vadd.xlane.f32.xlu0 %v391
    %v393 = vpop.xlane.xlu0 %392
    %v394 = vsel %vm315, %v309, 0.0
    %395 = vadd.xlane.f32.xlu0 %v394
    %v396 = vpop.xlane.xlu0 %395
    %v397 = vsel %vm315, %v310, 0.0
    %398 = vadd.xlane.f32.xlu0 %v397
    %v399 = vpop.xlane.xlu0 %398
    %v400 = vsel %vm315, %v311, 0.0
    %401 = vadd.xlane.f32.xlu0 %v400
    %v402 = vpop.xlane.xlu0 %401
    %v403 = vsel %vm315, %v312, 0.0
    %404 = vadd.xlane.f32.xlu0 %v403
    %v405 = vpop.xlane.xlu0 %404
    %v406 = vsel %vm315, %v313, 0.0
    %407 = vadd.xlane.f32.xlu0 %v406
    %v408 = vpop.xlane.xlu0 %407
    %v409 = vsel %vm315, %v314, 0.0
    %410 = vadd.xlane.f32.xlu0 %v409
    %v411 = vpop.xlane.xlu0 %410
    %v412 = vmul.f32 %v318, 0.015625
    %v413 = vmul.f32 %v321, 0.015625
    %v414 = vmul.f32 %v324, 0.015625
    %v415 = vmul.f32 %v327, 0.015625
    %v416 = vmul.f32 %v330, 0.015625
    %v417 = vmul.f32 %v333, 0.015625
    %v418 = vmul.f32 %v336, 0.015625
    %v419 = vmul.f32 %v339, 0.015625
    %v420 = vmul.f32 %v342, 0.015625
    %v421 = vmul.f32 %v345, 0.015625
    %v422 = vmul.f32 %v348, 0.015625
    %v423 = vmul.f32 %v351, 0.015625
    %v424 = vmul.f32 %v354, 0.015625
    %v425 = vmul.f32 %v357, 0.015625
    %v426 = vmul.f32 %v360, 0.015625
    %v427 = vmul.f32 %v363, 0.015625
    %v428 = vmul.f32 %v366, 0.015625
    %v429 = vmul.f32 %v369, 0.015625
    %v430 = vmul.f32 %v372, 0.015625
    %v431 = vmul.f32 %v375, 0.015625
    %v432 = vmul.f32 %v378, 0.015625
    %v433 = vmul.f32 %v381, 0.015625
    %v434 = vmul.f32 %v384, 0.015625
    %v435 = vmul.f32 %v387, 0.015625
    %v436 = vmul.f32 %v390, 0.015625
    %v437 = vmul.f32 %v393, 0.015625
    %v438 = vmul.f32 %v396, 0.015625
    %v439 = vmul.f32 %v399, 0.015625
    %v440 = vmul.f32 %v402, 0.015625
    %v441 = vmul.f32 %v405, 0.015625
    %v442 = vmul.f32 %v408, 0.015625
    %v443 = vmul.f32 %v411, 0.015625
    %v444 = vld [vmem:[%s2] sm:$0xff]
    %v445 = vld [vmem:[%s2 + $0x8] sm:$0xff]
    %v446 = vld [vmem:[%s2 + $0x10] sm:$0xff]
    %v447 = vld [vmem:[%s2 + $0x18] sm:$0xff]
    %v448 = vld [vmem:[%s3] sm:$0xff]
    %v449 = vld [vmem:[%s3 + $0x8] sm:$0xff]
    %v450 = vld [vmem:[%s3 + $0x10] sm:$0xff]
    %v451 = vld [vmem:[%s3 + $0x18] sm:$0xff]
    %v484 = vlaneseq
    %v485 = vand.u32 %v484, 127
    %v486 = vlaneseq
    %v487 = vshrl.u32 %v486, 7
    %v488 = vsub.s32 %v485, %v487
    %v489 = vrot.slane %v412, %v488
    %v490 = vadd.s32 %v485, 4294967288
    %v491 = vlaneseq
    %v492 = vshrl.u32 %v491, 7
    %v493 = vsub.s32 %v490, %v492
    %v494 = vrot.slane %v413, %v493
    %vm495 = vcmask 130112
    %v496 = vsel %vm495, %v494, %v489
    %v497 = vadd.s32 %v485, 4294967280
    %v498 = vlaneseq
    %v499 = vshrl.u32 %v498, 7
    %v500 = vsub.s32 %v497, %v499
    %v501 = vrot.slane %v414, %v500
    %vm502 = vcmask 195712
    %v503 = vsel %vm502, %v501, %v496
    %v504 = vadd.s32 %v485, 4294967272
    %v505 = vlaneseq
    %v506 = vshrl.u32 %v505, 7
    %v507 = vsub.s32 %v504, %v506
    %v508 = vrot.slane %v415, %v507
    %vm509 = vcmask 261312
    %v510 = vsel %vm509, %v508, %v503
    %v511 = vlaneseq
    %v512 = vshrl.u32 %v511, 7
    %v513 = vsub.s32 %v485, %v512
    %v514 = vrot.slane %v416, %v513
    %v515 = vlaneseq
    %v516 = vshrl.u32 %v515, 7
    %v517 = vsub.s32 %v490, %v516
    %v518 = vrot.slane %v417, %v517
    %v519 = vsel %vm495, %v518, %v514
    %v520 = vlaneseq
    %v521 = vshrl.u32 %v520, 7
    %v522 = vsub.s32 %v497, %v521
    %v523 = vrot.slane %v418, %v522
    %v524 = vsel %vm502, %v523, %v519
    %v525 = vlaneseq
    %v526 = vshrl.u32 %v525, 7
    %v527 = vsub.s32 %v504, %v526
    %v528 = vrot.slane %v419, %v527
    %v529 = vsel %vm509, %v528, %v524
    %v530 = vlaneseq
    %v531 = vshrl.u32 %v530, 7
    %v532 = vsub.s32 %v485, %v531
    %v533 = vrot.slane %v420, %v532
    %v534 = vlaneseq
    %v535 = vshrl.u32 %v534, 7
    %v536 = vsub.s32 %v490, %v535
    %v537 = vrot.slane %v421, %v536
    %v538 = vsel %vm495, %v537, %v533
    %v539 = vlaneseq
    %v540 = vshrl.u32 %v539, 7
    %v541 = vsub.s32 %v497, %v540
    %v542 = vrot.slane %v422, %v541
    %v543 = vsel %vm502, %v542, %v538
    %v544 = vlaneseq
    %v545 = vshrl.u32 %v544, 7
    %v546 = vsub.s32 %v504, %v545
    %v547 = vrot.slane %v423, %v546
    %v548 = vsel %vm509, %v547, %v543
    %v549 = vlaneseq
    %v550 = vshrl.u32 %v549, 7
    %v551 = vsub.s32 %v485, %v550
    %v552 = vrot.slane %v424, %v551
    %v553 = vlaneseq
    %v554 = vshrl.u32 %v553, 7
    %v555 = vsub.s32 %v490, %v554
    %v556 = vrot.slane %v425, %v555
    %v557 = vsel %vm495, %v556, %v552
    %v558 = vlaneseq
    %v559 = vshrl.u32 %v558, 7
    %v560 = vsub.s32 %v497, %v559
    %v561 = vrot.slane %v426, %v560
    %v562 = vsel %vm502, %v561, %v557
    %v563 = vlaneseq
    %v564 = vshrl.u32 %v563, 7
    %v565 = vsub.s32 %v504, %v564
    %v566 = vrot.slane %v427, %v565
    %v567 = vsel %vm509, %v566, %v562
    %v568 = vlaneseq
    %v569 = vshrl.u32 %v568, 7
    %v570 = vsub.s32 %v485, %v569
    %v571 = vrot.slane %v428, %v570
    %v572 = vlaneseq
    %v573 = vshrl.u32 %v572, 7
    %v574 = vsub.s32 %v490, %v573
    %v575 = vrot.slane %v429, %v574
    %v576 = vsel %vm495, %v575, %v571
    %v577 = vlaneseq
    %v578 = vshrl.u32 %v577, 7
    %v579 = vsub.s32 %v497, %v578
    %v580 = vrot.slane %v430, %v579
    %v581 = vsel %vm502, %v580, %v576
    %v582 = vlaneseq
    %v583 = vshrl.u32 %v582, 7
    %v584 = vsub.s32 %v504, %v583
    %v585 = vrot.slane %v431, %v584
    %v586 = vsel %vm509, %v585, %v581
    %v587 = vlaneseq
    %v588 = vshrl.u32 %v587, 7
    %v589 = vsub.s32 %v485, %v588
    %v590 = vrot.slane %v432, %v589
    %v591 = vlaneseq
    %v592 = vshrl.u32 %v591, 7
    %v593 = vsub.s32 %v490, %v592
    %v594 = vrot.slane %v433, %v593
    %v595 = vsel %vm495, %v594, %v590
    %v596 = vlaneseq
    %v597 = vshrl.u32 %v596, 7
    %v598 = vsub.s32 %v497, %v597
    %v599 = vrot.slane %v434, %v598
    %v600 = vsel %vm502, %v599, %v595
    %v601 = vlaneseq
    %v602 = vshrl.u32 %v601, 7
    %v603 = vsub.s32 %v504, %v602
    %v604 = vrot.slane %v435, %v603
    %v605 = vsel %vm509, %v604, %v600
    %v606 = vlaneseq
    %v607 = vshrl.u32 %v606, 7
    %v608 = vsub.s32 %v485, %v607
    %v609 = vrot.slane %v436, %v608
    %v610 = vlaneseq
    %v611 = vshrl.u32 %v610, 7
    %v612 = vsub.s32 %v490, %v611
    %v613 = vrot.slane %v437, %v612
    %v614 = vsel %vm495, %v613, %v609
    %v615 = vlaneseq
    %v616 = vshrl.u32 %v615, 7
    %v617 = vsub.s32 %v497, %v616
    %v618 = vrot.slane %v438, %v617
    %v619 = vsel %vm502, %v618, %v614
    %v620 = vlaneseq
    %v621 = vshrl.u32 %v620, 7
    %v622 = vsub.s32 %v504, %v621
    %v623 = vrot.slane %v439, %v622
    %v624 = vsel %vm509, %v623, %v619
    %v625 = vlaneseq
    %v626 = vshrl.u32 %v625, 7
    %v627 = vsub.s32 %v485, %v626
    %v628 = vrot.slane %v440, %v627
    %v629 = vlaneseq
    %v630 = vshrl.u32 %v629, 7
    %v631 = vsub.s32 %v490, %v630
    %v632 = vrot.slane %v441, %v631
    %v633 = vsel %vm495, %v632, %v628
    %v634 = vlaneseq
    %v635 = vshrl.u32 %v634, 7
    %v636 = vsub.s32 %v497, %v635
    %v637 = vrot.slane %v442, %v636
    %v638 = vsel %vm502, %v637, %v633
    %v639 = vlaneseq
    %v640 = vshrl.u32 %v639, 7
    %v641 = vsub.s32 %v504, %v640
    %v642 = vrot.slane %v443, %v641
    %v643 = vsel %vm509, %v642, %v638
    %vm644 = vcmask 1041409
    %v645 = vsel %vm644, %v529, %v510
    %vm646 = vcmask 1042434
    %v647 = vsel %vm646, %v548, %v645
    %vm648 = vcmask 1043459
    %v649 = vsel %vm648, %v567, %v647
    %vm650 = vcmask 1044484
    %v651 = vsel %vm650, %v586, %v649
    %vm652 = vcmask 1045509
    %v653 = vsel %vm652, %v605, %v651
    %vm654 = vcmask 1046534
    %v655 = vsel %vm654, %v624, %v653
    %vm656 = vcmask 1047559
    %v657 = vsel %vm656, %v643, %v655
    %v658 = vsel %vm106, %v657, 0
    %660 = vmatprep.subr.mxu0 0.0
    %661 = vmatpush1.msra.mxu0 %v448
    %662 = vmatprep.subr.mxu0 0.0
    %663 = vmatpush1.msra.mxu0 %v449
    %664 = vmatprep.subr.mxu0 0.0
    %665 = vmatpush1.msra.mxu0 %v450
    %666 = vmatprep.subr.mxu0 0.0
    %667 = vmatpush1.msra.mxu0 %v451
    %668 = vmatprep.subr.mxu0 0.0
    %669 = vmatpush1.msra.mxu0 0.0
    %670 = vmatprep.subr.mxu0 0.0
    %671 = vmatpush1.msra.mxu0 0.0
    %672 = vmatprep.subr.mxu0 0.0
    %673 = vmatpush1.msra.mxu0 0.0
    %674 = vmatprep.subr.mxu0 0.0
    %675 = vmatpush1.msra.mxu0 0.0
    %676 = vmatprep.subr.mxu0 0.0
    %677 = vmatpush1.msra.mxu0 0.0
    %678 = vmatprep.subr.mxu0 0.0
    %679 = vmatpush1.msra.mxu0 0.0
    %680 = vmatprep.subr.mxu0 0.0
    %681 = vmatpush1.msra.mxu0 0.0
    %682 = vmatprep.subr.mxu0 0.0
    %683 = vmatpush1.msra.mxu0 0.0
    %684 = vmatprep.subr.mxu0 0.0
    %685 = vmatpush1.msra.mxu0 0.0
    %686 = vmatprep.subr.mxu0 0.0
    %687 = vmatpush1.msra.mxu0 0.0
    %688 = vmatprep.subr.mxu0 0.0
    %689 = vmatpush1.msra.mxu0 0.0
    %690 = vmatprep.subr.mxu0 0.0
    %691 = vmatpush1.msra.mxu0 0.0
    %692 = vmatprep.subr.mxu0 0.0
    %693 = vmatpush1.msra.mxu0 0.0
    %694 = vmatprep.subr.mxu0 0.0
    %695 = vmatpush1.msra.mxu0 0.0
    %696 = vmatprep.subr.mxu0 0.0
    %697 = vmatpush1.msra.mxu0 0.0
    %698 = vmatprep.subr.mxu0 0.0
    %699 = vmatpush1.msra.mxu0 0.0
    %700 = vmatprep.subr.mxu0 0.0
    %701 = vmatpush1.msra.mxu0 0.0
    %702 = vmatprep.subr.mxu0 0.0
    %703 = vmatpush1.msra.mxu0 0.0
    %704 = vmatprep.subr.mxu0 0.0
    %705 = vmatpush1.msra.mxu0 0.0
    %706 = vmatprep.subr.mxu0 0.0
    %707 = vmatpush1.msra.mxu0 0.0
    %708 = vmatprep.subr.mxu0 0.0
    %709 = vmatpush1.msra.mxu0 0.0
    %710 = vmatprep.subr.mxu0 0.0
    %711 = vmatpush1.msra.mxu0 0.0
    %712 = vmatprep.subr.mxu0 0.0
    %713 = vmatpush1.msra.mxu0 0.0
    %714 = vmatprep.subr.mxu0 0.0
    %715 = vmatpush1.msra.mxu0 0.0
    %716 = vmatprep.subr.mxu0 0.0
    %717 = vmatpush1.msra.mxu0 0.0
    %718 = vmatprep.subr.mxu0 0.0
    %719 = vmatpush1.msra.mxu0 0.0
    %720 = vmatprep.subr.mxu0 0.0
    %721 = vmatpush1.msra.mxu0 0.0
    %722 = vmatprep.subr.mxu0 0.0
    %723 = vmatpush1.msra.mxu0 0.0
    %724 = vmatprep.mubr.f32.mxu0 0.0
    %725 = vmatmul.mubr.f32.gmra.mrb[0].mxu0 %v658
    %v726 = vpop.f32.mrb[0].mxu0
    %v727 = vadd.f32 0.0, %v726
    %v728 = vpop.f32.mrb[0].mxu0
    %729 = vdwg.mxu0
    %v738 = vsel %vm644, %v276, %v275
    %v739 = vsel %vm646, %v277, %v738
    %v740 = vsel %vm648, %v278, %v739
    %v741 = vsel %vm650, %v279, %v740
    %v742 = vsel %vm652, %v280, %v741
    %v743 = vsel %vm654, %v281, %v742
    %v744 = vsel %vm656, %v282, %v743
    %v745 = vsel %vm106, %v744, 0
    %747 = vmatprep.subr.mxu0 0.0
    %748 = vmatpush1.msra.mxu0 %v444
    %749 = vmatprep.subr.mxu0 0.0
    %750 = vmatpush1.msra.mxu0 %v445
    %751 = vmatprep.subr.mxu0 0.0
    %752 = vmatpush1.msra.mxu0 %v446
    %753 = vmatprep.subr.mxu0 0.0
    %754 = vmatpush1.msra.mxu0 %v447
    %755 = vmatprep.subr.mxu0 0.0
    %756 = vmatpush1.msra.mxu0 0.0
    %757 = vmatprep.subr.mxu0 0.0
    %758 = vmatpush1.msra.mxu0 0.0
    %759 = vmatprep.subr.mxu0 0.0
    %760 = vmatpush1.msra.mxu0 0.0
    %761 = vmatprep.subr.mxu0 0.0
    %762 = vmatpush1.msra.mxu0 0.0
    %763 = vmatprep.subr.mxu0 0.0
    %764 = vmatpush1.msra.mxu0 0.0
    %765 = vmatprep.subr.mxu0 0.0
    %766 = vmatpush1.msra.mxu0 0.0
    %767 = vmatprep.subr.mxu0 0.0
    %768 = vmatpush1.msra.mxu0 0.0
    %769 = vmatprep.subr.mxu0 0.0
    %770 = vmatpush1.msra.mxu0 0.0
    %771 = vmatprep.subr.mxu0 0.0
    %772 = vmatpush1.msra.mxu0 0.0
    %773 = vmatprep.subr.mxu0 0.0
    %774 = vmatpush1.msra.mxu0 0.0
    %775 = vmatprep.subr.mxu0 0.0
    %776 = vmatpush1.msra.mxu0 0.0
    %777 = vmatprep.subr.mxu0 0.0
    %778 = vmatpush1.msra.mxu0 0.0
    %779 = vmatprep.subr.mxu0 0.0
    %780 = vmatpush1.msra.mxu0 0.0
    %781 = vmatprep.subr.mxu0 0.0
    %782 = vmatpush1.msra.mxu0 0.0
    %783 = vmatprep.subr.mxu0 0.0
    %784 = vmatpush1.msra.mxu0 0.0
    %785 = vmatprep.subr.mxu0 0.0
    %786 = vmatpush1.msra.mxu0 0.0
    %787 = vmatprep.subr.mxu0 0.0
    %788 = vmatpush1.msra.mxu0 0.0
    %789 = vmatprep.subr.mxu0 0.0
    %790 = vmatpush1.msra.mxu0 0.0
    %791 = vmatprep.subr.mxu0 0.0
    %792 = vmatpush1.msra.mxu0 0.0
    %793 = vmatprep.subr.mxu0 0.0
    %794 = vmatpush1.msra.mxu0 0.0
    %795 = vmatprep.subr.mxu0 0.0
    %796 = vmatpush1.msra.mxu0 0.0
    %797 = vmatprep.subr.mxu0 0.0
    %798 = vmatpush1.msra.mxu0 0.0
    %799 = vmatprep.subr.mxu0 0.0
    %800 = vmatpush1.msra.mxu0 0.0
    %801 = vmatprep.subr.mxu0 0.0
    %802 = vmatpush1.msra.mxu0 0.0
    %803 = vmatprep.subr.mxu0 0.0
    %804 = vmatpush1.msra.mxu0 0.0
    %805 = vmatprep.subr.mxu0 0.0
    %806 = vmatpush1.msra.mxu0 0.0
    %807 = vmatprep.subr.mxu0 0.0
    %808 = vmatpush1.msra.mxu0 0.0
    %809 = vmatprep.subr.mxu0 0.0
    %810 = vmatpush1.msra.mxu0 0.0
    %811 = vmatprep.mubr.f32.mxu0 0.0
    %812 = vmatmul.mubr.f32.gmra.mrb[0].mxu0 %v745
    %v813 = vpop.f32.mrb[0].mxu0
    %v814 = vadd.f32 %v727, %v813
    %v815 = vpop.f32.mrb[0].mxu0
    %816 = vdwg.mxu0
    %v817 = vld [vmem:[%s4] sm:$0x1]
    %v819 = vlaneseq
    %v820 = vshrl.u32 %v819, 7
    %v821 = vsub.s32 0, %v820
    %v822 = vrot.slane %v817, %v821
    %v824 = vadd.f32 %v814, %v822
    %v825 = vmul.f32 %v824, 0.5
    %v826 = vmul.f32 %v824, 0.70710677
    %v827 = verf.f32.pop %v826
    %v828 = vadd.f32 %v827, 1.0
    %v829 = vmul.f32 %v825, %v828
    %830 = vadd.xlane.f32.xlu0 %v829
    %v831 = vpop.xlane.xlu0 %830
    %v832 = vmul.f32 %v831, 0.03125
    %v833 = vsub.f32 %v829, %v832
    %vm834 = vcmp.lt.s32.totalorder %v485, 32
    %v835 = vsel %vm834, 1, 0
    %v836 = vcvt.s32.f32 %v835
    %v837 = vmul.f32 %v833, %v836
    %v838 = vmul.f32 %v837, %v837
    %839 = vadd.xlane.f32.xlu0 %v838
    %v840 = vpop.xlane.xlu0 %839
    %v841 = vmul.f32 %v840, 0.03125
    %v842 = vadd.f32 %v841, 1e-05
    %v843 = vrsqrt.pop %v842
    %v844 = vmul.f32 %v837, %v843
    %v845 = vld [vmem:[%s5] sm:$0x1]
    %v847 = vlaneseq
    %v848 = vshrl.u32 %v847, 7
    %v849 = vsub.s32 0, %v848
    %v850 = vrot.slane %v845, %v849
    %v852 = vmul.f32 %v844, %v850
    %v853 = vld [vmem:[%s6] sm:$0x1]
    %v855 = vlaneseq
    %v856 = vshrl.u32 %v855, 7
    %v857 = vsub.s32 0, %v856
    %v858 = vrot.slane %v853, %v857
    %v860 = vadd.f32 %v852, %v858
    %v861 = vld [vmem:[%s7] sm:$0xff]
    %v862 = vld [vmem:[%s7 + $0x8] sm:$0xff]
    %v863 = vld [vmem:[%s7 + $0x10] sm:$0xff]
    %v864 = vld [vmem:[%s7 + $0x18] sm:$0xff]
    %v865 = vld [vmem:[%s7 + $0x20] sm:$0xff]
    %v866 = vld [vmem:[%s7 + $0x28] sm:$0xff]
    %v867 = vld [vmem:[%s7 + $0x30] sm:$0xff]
    %v868 = vld [vmem:[%s7 + $0x38] sm:$0xff]
    %v869 = vld [vmem:[%s7 + $0x40] sm:$0xff]
    %v870 = vld [vmem:[%s7 + $0x48] sm:$0xff]
    %v871 = vld [vmem:[%s7 + $0x50] sm:$0xff]
    %v872 = vld [vmem:[%s7 + $0x58] sm:$0xff]
    %v873 = vld [vmem:[%s7 + $0x60] sm:$0xff]
    %v874 = vld [vmem:[%s7 + $0x68] sm:$0xff]
    %v875 = vld [vmem:[%s7 + $0x70] sm:$0xff]
    %v876 = vld [vmem:[%s7 + $0x78] sm:$0xff]
    %v877 = vld [vmem:[%s8] sm:$0x1]
    %v879 = vlaneseq
    %v880 = vshrl.u32 %v879, 7
    %v881 = vsub.s32 0, %v880
    %v882 = vrot.slane %v877, %v881
    %884 = vmatprep.subr.mxu0 0.0
    %885 = vmatpush1.msra.mxu0 %v861
    %886 = vmatprep.subr.mxu0 0.0
    %887 = vmatpush1.msra.mxu0 %v862
    %888 = vmatprep.subr.mxu0 0.0
    %889 = vmatpush1.msra.mxu0 %v863
    %890 = vmatprep.subr.mxu0 0.0
    %891 = vmatpush1.msra.mxu0 %v864
    %892 = vmatprep.subr.mxu0 0.0
    %893 = vmatpush1.msra.mxu0 %v865
    %894 = vmatprep.subr.mxu0 0.0
    %895 = vmatpush1.msra.mxu0 %v866
    %896 = vmatprep.subr.mxu0 0.0
    %897 = vmatpush1.msra.mxu0 %v867
    %898 = vmatprep.subr.mxu0 0.0
    %899 = vmatpush1.msra.mxu0 %v868
    %900 = vmatprep.subr.mxu0 0.0
    %901 = vmatpush1.msra.mxu0 %v869
    %902 = vmatprep.subr.mxu0 0.0
    %903 = vmatpush1.msra.mxu0 %v870
    %904 = vmatprep.subr.mxu0 0.0
    %905 = vmatpush1.msra.mxu0 %v871
    %906 = vmatprep.subr.mxu0 0.0
    %907 = vmatpush1.msra.mxu0 %v872
    %908 = vmatprep.subr.mxu0 0.0
    %909 = vmatpush1.msra.mxu0 %v873
    %910 = vmatprep.subr.mxu0 0.0
    %911 = vmatpush1.msra.mxu0 %v874
    %912 = vmatprep.subr.mxu0 0.0
    %913 = vmatpush1.msra.mxu0 %v875
    %914 = vmatprep.subr.mxu0 0.0
    %915 = vmatpush1.msra.mxu0 %v876
    %916 = vmatprep.subr.mxu0 0.0
    %917 = vmatpush1.msra.mxu0 0.0
    %918 = vmatprep.subr.mxu0 0.0
    %919 = vmatpush1.msra.mxu0 0.0
    %920 = vmatprep.subr.mxu0 0.0
    %921 = vmatpush1.msra.mxu0 0.0
    %922 = vmatprep.subr.mxu0 0.0
    %923 = vmatpush1.msra.mxu0 0.0
    %924 = vmatprep.subr.mxu0 0.0
    %925 = vmatpush1.msra.mxu0 0.0
    %926 = vmatprep.subr.mxu0 0.0
    %927 = vmatpush1.msra.mxu0 0.0
    %928 = vmatprep.subr.mxu0 0.0
    %929 = vmatpush1.msra.mxu0 0.0
    %930 = vmatprep.subr.mxu0 0.0
    %931 = vmatpush1.msra.mxu0 0.0
    %932 = vmatprep.subr.mxu0 0.0
    %933 = vmatpush1.msra.mxu0 0.0
    %934 = vmatprep.subr.mxu0 0.0
    %935 = vmatpush1.msra.mxu0 0.0
    %936 = vmatprep.subr.mxu0 0.0
    %937 = vmatpush1.msra.mxu0 0.0
    %938 = vmatprep.subr.mxu0 0.0
    %939 = vmatpush1.msra.mxu0 0.0
    %940 = vmatprep.subr.mxu0 0.0
    %941 = vmatpush1.msra.mxu0 0.0
    %942 = vmatprep.subr.mxu0 0.0
    %943 = vmatpush1.msra.mxu0 0.0
    %944 = vmatprep.subr.mxu0 0.0
    %945 = vmatpush1.msra.mxu0 0.0
    %946 = vmatprep.subr.mxu0 0.0
    %947 = vmatpush1.msra.mxu0 0.0
    %948 = vmatprep.mubr.f32.mxu0 0.0
    %949 = vmatmul.mubr.f32.gmra.mrb[0].mxu0 %v860
    %v950 = vpop.f32.mrb[0].mxu0
    %v951 = vadd.f32 %v882, %v950
    %v952 = vpop.f32.mrb[0].mxu0
    %953 = vdwg.mxu0
    %954 = vst [vmem:[#allocation2] sm:$0xff] %v951
    %v955 = vld [vmem:[%s9] sm:$0xff]
    %v956 = vld [vmem:[%s9 + $0x8] sm:$0xff]
    %v957 = vld [vmem:[%s9 + $0x10] sm:$0xff]
    %v958 = vld [vmem:[%s9 + $0x18] sm:$0xff]
    %v959 = vld [vmem:[%s9 + $0x20] sm:$0xff]
    %v960 = vld [vmem:[%s9 + $0x28] sm:$0xff]
    %v961 = vld [vmem:[%s9 + $0x30] sm:$0xff]
    %v962 = vld [vmem:[%s9 + $0x38] sm:$0xff]
    %v963 = vld [vmem:[%s9 + $0x40] sm:$0xff]
    %v964 = vld [vmem:[%s9 + $0x48] sm:$0xff]
    %v965 = vld [vmem:[%s9 + $0x50] sm:$0xff]
    %v966 = vld [vmem:[%s9 + $0x58] sm:$0xff]
    %v967 = vld [vmem:[%s9 + $0x60] sm:$0xff]
    %v968 = vld [vmem:[%s9 + $0x68] sm:$0xff]
    %v969 = vld [vmem:[%s9 + $0x70] sm:$0xff]
    %v970 = vld [vmem:[%s9 + $0x78] sm:$0xff]
    %v971 = vld [vmem:[%s10] sm:$0x1]
    %v973 = vlaneseq
    %v974 = vshrl.u32 %v973, 7
    %v975 = vsub.s32 0, %v974
    %v976 = vrot.slane %v971, %v975
    %978 = vmatprep.subr.mxu0 0.0
    %979 = vmatpush1.msra.mxu0 %v955
    %980 = vmatprep.subr.mxu0 0.0
    %981 = vmatpush1.msra.mxu0 %v956
    %982 = vmatprep.subr.mxu0 0.0
    %983 = vmatpush1.msra.mxu0 %v957
    %984 = vmatprep.subr.mxu0 0.0
    %985 = vmatpush1.msra.mxu0 %v958
    %986 = vmatprep.subr.mxu0 0.0
    %987 = vmatpush1.msra.mxu0 %v959
    %988 = vmatprep.subr.mxu0 0.0
    %989 = vmatpush1.msra.mxu0 %v960
    %990 = vmatprep.subr.mxu0 0.0
    %991 = vmatpush1.msra.mxu0 %v961
    %992 = vmatprep.subr.mxu0 0.0
    %993 = vmatpush1.msra.mxu0 %v962
    %994 = vmatprep.subr.mxu0 0.0
    %995 = vmatpush1.msra.mxu0 %v963
    %996 = vmatprep.subr.mxu0 0.0
    %997 = vmatpush1.msra.mxu0 %v964
    %998 = vmatprep.subr.mxu0 0.0
    %999 = vmatpush1.msra.mxu0 %v965
    %1000 = vmatprep.subr.mxu0 0.0
    %1001 = vmatpush1.msra.mxu0 %v966
    %1002 = vmatprep.subr.mxu0 0.0
    %1003 = vmatpush1.msra.mxu0 %v967
    %1004 = vmatprep.subr.mxu0 0.0
    %1005 = vmatpush1.msra.mxu0 %v968
    %1006 = vmatprep.subr.mxu0 0.0
    %1007 = vmatpush1.msra.mxu0 %v969
    %1008 = vmatprep.subr.mxu0 0.0
    %1009 = vmatpush1.msra.mxu0 %v970
    %1010 = vmatprep.subr.mxu0 0.0
    %1011 = vmatpush1.msra.mxu0 0.0
    %1012 = vmatprep.subr.mxu0 0.0
    %1013 = vmatpush1.msra.mxu0 0.0
    %1014 = vmatprep.subr.mxu0 0.0
    %1015 = vmatpush1.msra.mxu0 0.0
    %1016 = vmatprep.subr.mxu0 0.0
    %1017 = vmatpush1.msra.mxu0 0.0
    %1018 = vmatprep.subr.mxu0 0.0
    %1019 = vmatpush1.msra.mxu0 0.0
    %1020 = vmatprep.subr.mxu0 0.0
    %1021 = vmatpush1.msra.mxu0 0.0
    %1022 = vmatprep.subr.mxu0 0.0
    %1023 = vmatpush1.msra.mxu0 0.0
    %1024 = vmatprep.subr.mxu0 0.0
    %1025 = vmatpush1.msra.mxu0 0.0
    %1026 = vmatprep.subr.mxu0 0.0
    %1027 = vmatpush1.msra.mxu0 0.0
    %1028 = vmatprep.subr.mxu0 0.0
    %1029 = vmatpush1.msra.mxu0 0.0
    %1030 = vmatprep.subr.mxu0 0.0
    %1031 = vmatpush1.msra.mxu0 0.0
    %1032 = vmatprep.subr.mxu0 0.0
    %1033 = vmatpush1.msra.mxu0 0.0
    %1034 = vmatprep.subr.mxu0 0.0
    %1035 = vmatpush1.msra.mxu0 0.0
    %1036 = vmatprep.subr.mxu0 0.0
    %1037 = vmatpush1.msra.mxu0 0.0
    %1038 = vmatprep.subr.mxu0 0.0
    %1039 = vmatpush1.msra.mxu0 0.0
    %1040 = vmatprep.subr.mxu0 0.0
    %1041 = vmatpush1.msra.mxu0 0.0
    %1042 = vmatprep.mubr.f32.mxu0 0.0
    %1043 = vmatmul.mubr.f32.gmra.mrb[0].mxu0 %v860
    %v1044 = vpop.f32.mrb[0].mxu0
    %v1045 = vadd.f32 %v976, %v1044
    %v1046 = vpop.f32.mrb[0].mxu0
    %1047 = vdwg.mxu0
    %v1048 = vtanh.pop %v1045
    %1049 = vst [vmem:[#allocation4] sm:$0xff] %v1048
    // Predicated region
    $region46: #{tpu_custom_call.1} parent=1 // pred_check
      _
    $region47: #{tpu_custom_call.1} parent=1 // pred_check_branch
      %1051 = sbr.rel (0) target = $region49
    $region48: #{tpu_custom_call.1} parent=1 // pred_region
      %s1053 = ssub.s32 128, 128
      %1054 = vsyncadd [#allocation3], %s1053
      %s1056 = sshll.u32 [#allocation2], 4
      %s1057 = int_to_ptr.vmem [resolvable:$true] %s1056
      %1059 = dma.vmem_to_hbm [thread:$0]  %s1057, 128, %s11, [#allocation3]
    $region49: #{tpu_custom_call.1} parent=1 // pred_fallthru
      _
    // Predicated region
    $region50: #{tpu_custom_call.1} parent=1 // pred_check
      _
    $region51: #{tpu_custom_call.1} parent=1 // pred_check_branch
      %1061 = sbr.rel (0) target = $region53
    $region52: #{tpu_custom_call.1} parent=1 // pred_region
      %s1063 = ssub.s32 128, 128
      %1064 = vsyncadd [#allocation5], %s1063
      %s1066 = sshll.u32 [#allocation4], 4
      %s1067 = int_to_ptr.vmem [resolvable:$true] %s1066
      %1069 = dma.vmem_to_hbm [thread:$0]  %s1067, 128, %s12, [#allocation5]
    $region53: #{tpu_custom_call.1} parent=1 // pred_fallthru
      _
    // Predicated region
    $region54: #{tpu_custom_call.1} parent=1 // pred_check
      _
    $region55: #{tpu_custom_call.1} parent=1 // pred_check_branch
      %1071 = sbr.rel (0) target = $region57
    $region56: #{tpu_custom_call.1} parent=1 // pred_region
      %1072 = dma.done [#allocation3], 128
    $region57: #{tpu_custom_call.1} parent=1 // pred_fallthru
      _
    // Predicated region
    $region58: #{tpu_custom_call.1} parent=1 // pred_check
      _
    $region59: #{tpu_custom_call.1} parent=1 // pred_check_branch
      %1074 = sbr.rel (0) target = $region61
    $region60: #{tpu_custom_call.1} parent=1 // pred_region
      %1075 = dma.done [#allocation5], 128
    $region61: #{tpu_custom_call.1} parent=1 // pred_fallthru
      _
    %1076 = vsyncpa [#allocation3], 1
    %1077 = vsyncpa [#allocation5], 1

// kernel: tpu_custom_call.1
$region0: #{tpu_custom_call.1}
  #allocation0 [shape = 'u32[]', space=smem, size = 0x4, offset = 0x4, fixed_abs, tag = 'smem constant byte address 0x4 - core index']
  #allocation1 [shape = 'u32[144,128]{1,0:T(1,128)}', space=vmem, size = 0x12000, scoped, tag = 'internal scratch']
  %s0 = inlined_call_operand.vmem [shape: f32[8,64,32], index: 0, kind: input, shape index: {}]
  %s1 = inlined_call_operand.vmem [shape: f32[8,32,64], index: 1, kind: input, shape index: {}]
  %s2 = inlined_call_operand.vmem [shape: f32[32,128], index: 2, kind: input, shape index: {}]
  %s3 = inlined_call_operand.vmem [shape: f32[32,128], index: 3, kind: input, shape index: {}]
  %s4 = inlined_call_operand.vmem [shape: f32[1,128], index: 4, kind: input, shape index: {}]
  %s5 = inlined_call_operand.vmem [shape: f32[1,128], index: 5, kind: input, shape index: {}]
  %s6 = inlined_call_operand.vmem [shape: f32[1,128], index: 6, kind: input, shape index: {}]
  %s7 = inlined_call_operand.vmem [shape: f32[128,128], index: 7, kind: input, shape index: {}]
  %s8 = inlined_call_operand.vmem [shape: f32[1,128], index: 8, kind: input, shape index: {}]
  %s9 = inlined_call_operand.vmem [shape: f32[128,128], index: 9, kind: input, shape index: {}]
  %s10 = inlined_call_operand.vmem [shape: f32[1,128], index: 10, kind: input, shape index: {}]
  %s11 = inlined_call_operand.hbm [shape: f32[8,128], index: 11, kind: output, shape index: {0}]
  %s12 = inlined_call_operand.hbm [shape: f32[8,128], index: 12, kind: output, shape index: {1}]
  %13 = xla_tuple %s11, %s12
  %s14 = sld [smem:[#allocation0]]
  $region62: #{tpu_custom_call.1} parent=0
    _
  %s16 = ssub.s32 1, %s14
  %s17 = scalar_select 0, %s16, %s14
  $region1: #{tpu_custom_call.1} parent=0
    #allocation2 [shape = 'u8[4096]{0}', space=vmem, size = 0x1000, scoped, tag = 'output window, operand 0, single buffered']
    #allocation3 [shape = 's32[1]{0}', space=sflag, size = 0x4, scoped, tag = 'scoped memory for tpu_custom_call.1']
    #allocation4 [shape = 'u8[4096]{0}', space=vmem, size = 0x1000, scoped, tag = 'output window, operand 1, single buffered']
    #allocation5 [shape = 's32[1]{0}', space=sflag, size = 0x4, scoped, tag = 'scoped memory for tpu_custom_call.1']
    %18 = vsyncpa [#allocation3], 0
    %19 = vsyncpa [#allocation5], 0
    // Predicated region
    $region2: #{tpu_custom_call.1} parent=1 // pred_check
      _
    $region3: #{tpu_custom_call.1} parent=1 // pred_check_branch
      %21 = sbr.rel (0) target = $region5
    $region4: #{tpu_custom_call.1} parent=1 // pred_region
      _
    $region5: #{tpu_custom_call.1} parent=1 // pred_fallthru
      _
    // Predicated region
    $region6: #{tpu_custom_call.1} parent=1 // pred_check
      _
    $region7: #{tpu_custom_call.1} parent=1 // pred_check_branch
      %23 = sbr.rel (0) target = $region9
    $region8: #{tpu_custom_call.1} parent=1 // pred_region
      _
    $region9: #{tpu_custom_call.1} parent=1 // pred_fallthru
      _
    // Predicated region
    $region10: #{tpu_custom_call.1} parent=1 // pred_check
      _
    $region11: #{tpu_custom_call.1} parent=1 // pred_check_branch
      %25 = sbr.rel (0) target = $region13
    $region12: #{tpu_custom_call.1} parent=1 // pred_region
      _
    $region13: #{tpu_custom_call.1} parent=1 // pred_fallthru
      _
    // Predicated region
    $region14: #{tpu_custom_call.1} parent=1 // pred_check
      _
    $region15: #{tpu_custom_call.1} parent=1 // pred_check_branch
      %27 = sbr.rel (0) target = $region17
    $region16: #{tpu_custom_call.1} parent=1 // pred_region
      _
    $region17: #{tpu_custom_call.1} parent=1 // pred_fallthru
      _
    // Predicated region
    $region18: #{tpu_custom_call.1} parent=1 // pred_check
      _
    $region19: #{tpu_custom_call.1} parent=1 // pred_check_branch
      %29 = sbr.rel (0) target = $region21
    $region20: #{tpu_custom_call.1} parent=1 // pred_region
      _
    $region21: #{tpu_custom_call.1} parent=1 // pred_fallthru
      _
    // Predicated region
    $region22: #{tpu_custom_call.1} parent=1 // pred_check
      _
    $region23: #{tpu_custom_call.1} parent=1 // pred_check_branch
      %31 = sbr.rel (0) target = $region25
    $region24: #{tpu_custom_call.1} parent=1 // pred_region
      _
    $region25: #{tpu_custom_call.1} parent=1 // pred_fallthru
      _
    // Predicated region
    $region26: #{tpu_custom_call.1} parent=1 // pred_check
      _
    $region27: #{tpu_custom_call.1} parent=1 // pred_check_branch
      %33 = sbr.rel (0) target = $region29
    $region28: #{tpu_custom_call.1} parent=1 // pred_region
      _
    $region29: #{tpu_custom_call.1} parent=1 // pred_fallthru
      _
    // Predicated region
    $region30: #{tpu_custom_call.1} parent=1 // pred_check
      _
    $region31: #{tpu_custom_call.1} parent=1 // pred_check_branch
      %35 = sbr.rel (0) target = $region33
    $region32: #{tpu_custom_call.1} parent=1 // pred_region
      _
    $region33: #{tpu_custom_call.1} parent=1 // pred_fallthru
      _
    // Predicated region
    $region34: #{tpu_custom_call.1} parent=1 // pred_check
      _
    $region35: #{tpu_custom_call.1} parent=1 // pred_check_branch
      %37 = sbr.rel (0) target = $region37
    $region36: #{tpu_custom_call.1} parent=1 // pred_region
      _
    $region37: #{tpu_custom_call.1} parent=1 // pred_fallthru
      _
    // Predicated region
    $region38: #{tpu_custom_call.1} parent=1 // pred_check
      _
    $region39: #{tpu_custom_call.1} parent=1 // pred_check_branch
      %39 = sbr.rel (0) target = $region41
    $region40: #{tpu_custom_call.1} parent=1 // pred_region
      _
    $region41: #{tpu_custom_call.1} parent=1 // pred_fallthru
      _
    // Predicated region
    $region42: #{tpu_custom_call.1} parent=1 // pred_check
      _
    $region43: #{tpu_custom_call.1} parent=1 // pred_check_branch
      %41 = sbr.rel (0) target = $region45
    $region44: #{tpu_custom_call.1} parent=1 // pred_region
      _
    $region45: #{tpu_custom_call.1} parent=1 // pred_fallthru
      _
    %v42 = vld [vmem:[%s0] sm:$0xff]
    %v43 = vld [vmem:[%s0 + $0x8] sm:$0xff]
    %v44 = vld [vmem:[%s0 + $0x10] sm:$0xff]
    %v45 = vld [vmem:[%s0 + $0x18] sm:$0xff]
    %v46 = vld [vmem:[%s0 + $0x20] sm:$0xff]
    %v47 = vld [vmem:[%s0 + $0x28] sm:$0xff]
    %v48 = vld [vmem:[%s0 + $0x30] sm:$0xff]
    %v49 = vld [vmem:[%s0 + $0x38] sm:$0xff]
    %v50 = vld [vmem:[%s0 + $0x40] sm:$0xff]
    %v51 = vld [vmem:[%s0 + $0x48] sm:$0xff]
    %v52 = vld [vmem:[%s0 + $0x50] sm:$0xff]
    %v53 = vld [vmem:[%s0 + $0x58] sm:$0xff]
    %v54 = vld [vmem:[%s0 + $0x60] sm:$0xff]
    %v55 = vld [vmem:[%s0 + $0x68] sm:$0xff]
    %v56 = vld [vmem:[%s0 + $0x70] sm:$0xff]
    %v57 = vld [vmem:[%s0 + $0x78] sm:$0xff]
    %v58 = vld [vmem:[%s0 + $0x80] sm:$0xff]
    %v59 = vld [vmem:[%s0 + $0x88] sm:$0xff]
    %v60 = vld [vmem:[%s0 + $0x90] sm:$0xff]
    %v61 = vld [vmem:[%s0 + $0x98] sm:$0xff]
    %v62 = vld [vmem:[%s0 + $0xa0] sm:$0xff]
    %v63 = vld [vmem:[%s0 + $0xa8] sm:$0xff]
    %v64 = vld [vmem:[%s0 + $0xb0] sm:$0xff]
    %v65 = vld [vmem:[%s0 + $0xb8] sm:$0xff]
    %v66 = vld [vmem:[%s0 + $0xc0] sm:$0xff]
    %v67 = vld [vmem:[%s0 + $0xc8] sm:$0xff]
    %v68 = vld [vmem:[%s0 + $0xd0] sm:$0xff]
    %v69 = vld [vmem:[%s0 + $0xd8] sm:$0xff]
    %v70 = vld [vmem:[%s0 + $0xe0] sm:$0xff]
    %v71 = vld [vmem:[%s0 + $0xe8] sm:$0xff]
    %v72 = vld [vmem:[%s0 + $0xf0] sm:$0xff]
    %v73 = vld [vmem:[%s0 + $0xf8] sm:$0xff]
    %v74 = vld [vmem:[%s0 + $0x100] sm:$0xff]
    %v75 = vld [vmem:[%s0 + $0x108] sm:$0xff]
    %v76 = vld [vmem:[%s0 + $0x110] sm:$0xff]
    %v77 = vld [vmem:[%s0 + $0x118] sm:$0xff]
    %v78 = vld [vmem:[%s0 + $0x120] sm:$0xff]
    %v79 = vld [vmem:[%s0 + $0x128] sm:$0xff]
    %v80 = vld [vmem:[%s0 + $0x130] sm:$0xff]
    %v81 = vld [vmem:[%s0 + $0x138] sm:$0xff]
    %v82 = vld [vmem:[%s0 + $0x140] sm:$0xff]
    %v83 = vld [vmem:[%s0 + $0x148] sm:$0xff]
    %v84 = vld [vmem:[%s0 + $0x150] sm:$0xff]
    %v85 = vld [vmem:[%s0 + $0x158] sm:$0xff]
    %v86 = vld [vmem:[%s0 + $0x160] sm:$0xff]
    %v87 = vld [vmem:[%s0 + $0x168] sm:$0xff]
    %v88 = vld [vmem:[%s0 + $0x170] sm:$0xff]
    %v89 = vld [vmem:[%s0 + $0x178] sm:$0xff]
    %v90 = vld [vmem:[%s0 + $0x180] sm:$0xff]
    %v91 = vld [vmem:[%s0 + $0x188] sm:$0xff]
    %v92 = vld [vmem:[%s0 + $0x190] sm:$0xff]
    %v93 = vld [vmem:[%s0 + $0x198] sm:$0xff]
    %v94 = vld [vmem:[%s0 + $0x1a0] sm:$0xff]
    %v95 = vld [vmem:[%s0 + $0x1a8] sm:$0xff]
    %v96 = vld [vmem:[%s0 + $0x1b0] sm:$0xff]
    %v97 = vld [vmem:[%s0 + $0x1b8] sm:$0xff]
    %v98 = vld [vmem:[%s0 + $0x1c0] sm:$0xff]
    %v99 = vld [vmem:[%s0 + $0x1c8] sm:$0xff]
    %v100 = vld [vmem:[%s0 + $0x1d0] sm:$0xff]
    %v101 = vld [vmem:[%s0 + $0x1d8] sm:$0xff]
    %v102 = vld [vmem:[%s0 + $0x1e0] sm:$0xff]
    %v103 = vld [vmem:[%s0 + $0x1e8] sm:$0xff]
    %v104 = vld [vmem:[%s0 + $0x1f0] sm:$0xff]
    %v105 = vld [vmem:[%s0 + $0x1f8] sm:$0xff]
    %vm106 = vcmask 261120
    %v107 = vsel %vm106, %v42, 0.0
    %v108 = vsel %vm106, %v43, 0.0
    %v109 = vadd.f32 %v107, %v108
    %v110 = vsel %vm106, %v44, 0.0
    %v111 = vadd.f32 %v109, %v110
    %v112 = vsel %vm106, %v45, 0.0
    %v113 = vadd.f32 %v111, %v112
    %v114 = vsel %vm106, %v46, 0.0
    %v115 = vadd.f32 %v113, %v114
    %v116 = vsel %vm106, %v47, 0.0
    %v117 = vadd.f32 %v115, %v116
    %v118 = vsel %vm106, %v48, 0.0
    %v119 = vadd.f32 %v117, %v118
    %v120 = vsel %vm106, %v49, 0.0
    %v121 = vadd.f32 %v119, %v120
    %v122 = vrot.slane %v121, 4
    %v123 = vadd.f32 %v121, %v122
    %v124 = vrot.slane %v123, 2
    %v125 = vadd.f32 %v123, %v124
    %v126 = vrot.slane %v125, 1
    %v127 = vadd.f32 %v125, %v126
    %v128 = vsel %vm106, %v50, 0.0
    %v129 = vsel %vm106, %v51, 0.0
    %v130 = vadd.f32 %v128, %v129
    %v131 = vsel %vm106, %v52, 0.0
    %v132 = vadd.f32 %v130, %v131
    %v133 = vsel %vm106, %v53, 0.0
    %v134 = vadd.f32 %v132, %v133
    %v135 = vsel %vm106, %v54, 0.0
    %v136 = vadd.f32 %v134, %v135
    %v137 = vsel %vm106, %v55, 0.0
    %v138 = vadd.f32 %v136, %v137
    %v139 = vsel %vm106, %v56, 0.0
    %v140 = vadd.f32 %v138, %v139
    %v141 = vsel %vm106, %v57, 0.0
    %v142 = vadd.f32 %v140, %v141
    %v143 = vrot.slane %v142, 4
    %v144 = vadd.f32 %v142, %v143
    %v145 = vrot.slane %v144, 2
    %v146 = vadd.f32 %v144, %v145
    %v147 = vrot.slane %v146, 1
    %v148 = vadd.f32 %v146, %v147
    %v149 = vsel %vm106, %v58, 0.0
    %v150 = vsel %vm106, %v59, 0.0
    %v151 = vadd.f32 %v149, %v150
    %v152 = vsel %vm106, %v60, 0.0
    %v153 = vadd.f32 %v151, %v152
    %v154 = vsel %vm106, %v61, 0.0
    %v155 = vadd.f32 %v153, %v154
    %v156 = vsel %vm106, %v62, 0.0
    %v157 = vadd.f32 %v155, %v156
    %v158 = vsel %vm106, %v63, 0.0
    %v159 = vadd.f32 %v157, %v158
    %v160 = vsel %vm106, %v64, 0.0
    %v161 = vadd.f32 %v159, %v160
    %v162 = vsel %vm106, %v65, 0.0
    %v163 = vadd.f32 %v161, %v162
    %v164 = vrot.slane %v163, 4
    %v165 = vadd.f32 %v163, %v164
    %v166 = vrot.slane %v165, 2
    %v167 = vadd.f32 %v165, %v166
    %v168 = vrot.slane %v167, 1
    %v169 = vadd.f32 %v167, %v168
    %v170 = vsel %vm106, %v66, 0.0
    %v171 = vsel %vm106, %v67, 0.0
    %v172 = vadd.f32 %v170, %v171
    %v173 = vsel %vm106, %v68, 0.0
    %v174 = vadd.f32 %v172, %v173
    %v175 = vsel %vm106, %v69, 0.0
    %v176 = vadd.f32 %v174, %v175
    %v177 = vsel %vm106, %v70, 0.0
    %v178 = vadd.f32 %v176, %v177
    %v179 = vsel %vm106, %v71, 0.0
    %v180 = vadd.f32 %v178, %v179
    %v181 = vsel %vm106, %v72, 0.0
    %v182 = vadd.f32 %v180, %v181
    %v183 = vsel %vm106, %v73, 0.0
    %v184 = vadd.f32 %v182, %v183
    %v185 = vrot.slane %v184, 4
    %v186 = vadd.f32 %v184, %v185
    %v187 = vrot.slane %v186, 2
    %v188 = vadd.f32 %v186, %v187
    %v189 = vrot.slane %v188, 1
    %v190 = vadd.f32 %v188, %v189
    %v191 = vsel %vm106, %v74, 0.0
    %v192 = vsel %vm106, %v75, 0.0
    %v193 = vadd.f32 %v191, %v192
    %v194 = vsel %vm106, %v76, 0.0
    %v195 = vadd.f32 %v193, %v194
    %v196 = vsel %vm106, %v77, 0.0
    %v197 = vadd.f32 %v195, %v196
    %v198 = vsel %vm106, %v78, 0.0
    %v199 = vadd.f32 %v197, %v198
    %v200 = vsel %vm106, %v79, 0.0
    %v201 = vadd.f32 %v199, %v200
    %v202 = vsel %vm106, %v80, 0.0
    %v203 = vadd.f32 %v201, %v202
    %v204 = vsel %vm106, %v81, 0.0
    %v205 = vadd.f32 %v203, %v204
    %v206 = vrot.slane %v205, 4
    %v207 = vadd.f32 %v205, %v206
    %v208 = vrot.slane %v207, 2
    %v209 = vadd.f32 %v207, %v208
    %v210 = vrot.slane %v209, 1
    %v211 = vadd.f32 %v209, %v210
    %v212 = vsel %vm106, %v82, 0.0
    %v213 = vsel %vm106, %v83, 0.0
    %v214 = vadd.f32 %v212, %v213
    %v215 = vsel %vm106, %v84, 0.0
    %v216 = vadd.f32 %v214, %v215
    %v217 = vsel %vm106, %v85, 0.0
    %v218 = vadd.f32 %v216, %v217
    %v219 = vsel %vm106, %v86, 0.0
    %v220 = vadd.f32 %v218, %v219
    %v221 = vsel %vm106, %v87, 0.0
    %v222 = vadd.f32 %v220, %v221
    %v223 = vsel %vm106, %v88, 0.0
    %v224 = vadd.f32 %v222, %v223
    %v225 = vsel %vm106, %v89, 0.0
    %v226 = vadd.f32 %v224, %v225
    %v227 = vrot.slane %v226, 4
    %v228 = vadd.f32 %v226, %v227
    %v229 = vrot.slane %v228, 2
    %v230 = vadd.f32 %v228, %v229
    %v231 = vrot.slane %v230, 1
    %v232 = vadd.f32 %v230, %v231
    %v233 = vsel %vm106, %v90, 0.0
    %v234 = vsel %vm106, %v91, 0.0
    %v235 = vadd.f32 %v233, %v234
    %v236 = vsel %vm106, %v92, 0.0
    %v237 = vadd.f32 %v235, %v236
    %v238 = vsel %vm106, %v93, 0.0
    %v239 = vadd.f32 %v237, %v238
    %v240 = vsel %vm106, %v94, 0.0
    %v241 = vadd.f32 %v239, %v240
    %v242 = vsel %vm106, %v95, 0.0
    %v243 = vadd.f32 %v241, %v242
    %v244 = vsel %vm106, %v96, 0.0
    %v245 = vadd.f32 %v243, %v244
    %v246 = vsel %vm106, %v97, 0.0
    %v247 = vadd.f32 %v245, %v246
    %v248 = vrot.slane %v247, 4
    %v249 = vadd.f32 %v247, %v248
    %v250 = vrot.slane %v249, 2
    %v251 = vadd.f32 %v249, %v250
    %v252 = vrot.slane %v251, 1
    %v253 = vadd.f32 %v251, %v252
    %v254 = vsel %vm106, %v98, 0.0
    %v255 = vsel %vm106, %v99, 0.0
    %v256 = vadd.f32 %v254, %v255
    %v257 = vsel %vm106, %v100, 0.0
    %v258 = vadd.f32 %v256, %v257
    %v259 = vsel %vm106, %v101, 0.0
    %v260 = vadd.f32 %v258, %v259
    %v261 = vsel %vm106, %v102, 0.0
    %v262 = vadd.f32 %v260, %v261
    %v263 = vsel %vm106, %v103, 0.0
    %v264 = vadd.f32 %v262, %v263
    %v265 = vsel %vm106, %v104, 0.0
    %v266 = vadd.f32 %v264, %v265
    %v267 = vsel %vm106, %v105, 0.0
    %v268 = vadd.f32 %v266, %v267
    %v269 = vrot.slane %v268, 4
    %v270 = vadd.f32 %v268, %v269
    %v271 = vrot.slane %v270, 2
    %v272 = vadd.f32 %v270, %v271
    %v273 = vrot.slane %v272, 1
    %v274 = vadd.f32 %v272, %v273
    %v275 = vmul.f32 %v127, 0.015625
    %v276 = vmul.f32 %v148, 0.015625
    %v277 = vmul.f32 %v169, 0.015625
    %v278 = vmul.f32 %v190, 0.015625
    %v279 = vmul.f32 %v211, 0.015625
    %v280 = vmul.f32 %v232, 0.015625
    %v281 = vmul.f32 %v253, 0.015625
    %v282 = vmul.f32 %v274, 0.015625
    %v283 = vld [vmem:[%s1] sm:$0xff]
    %v284 = vld [vmem:[%s1 + $0x8] sm:$0xff]
    %v285 = vld [vmem:[%s1 + $0x10] sm:$0xff]
    %v286 = vld [vmem:[%s1 + $0x18] sm:$0xff]
    %v287 = vld [vmem:[%s1 + $0x20] sm:$0xff]
    %v288 = vld [vmem:[%s1 + $0x28] sm:$0xff]
    %v289 = vld [vmem:[%s1 + $0x30] sm:$0xff]
    %v290 = vld [vmem:[%s1 + $0x38] sm:$0xff]
    %v291 = vld [vmem:[%s1 + $0x40] sm:$0xff]
    %v292 = vld [vmem:[%s1 + $0x48] sm:$0xff]
    %v293 = vld [vmem:[%s1 + $0x50] sm:$0xff]
    %v294 = vld [vmem:[%s1 + $0x58] sm:$0xff]
    %v295 = vld [vmem:[%s1 + $0x60] sm:$0xff]
    %v296 = vld [vmem:[%s1 + $0x68] sm:$0xff]
    %v297 = vld [vmem:[%s1 + $0x70] sm:$0xff]
    %v298 = vld [vmem:[%s1 + $0x78] sm:$0xff]
    %v299 = vld [vmem:[%s1 + $0x80] sm:$0xff]
    %v300 = vld [vmem:[%s1 + $0x88] sm:$0xff]
    %v301 = vld [vmem:[%s1 + $0x90] sm:$0xff]
    %v302 = vld [vmem:[%s1 + $0x98] sm:$0xff]
    %v303 = vld [vmem:[%s1 + $0xa0] sm:$0xff]
    %v304 = vld [vmem:[%s1 + $0xa8] sm:$0xff]
    %v305 = vld [vmem:[%s1 + $0xb0] sm:$0xff]
    %v306 = vld [vmem:[%s1 + $0xb8] sm:$0xff]
    %v307 = vld [vmem:[%s1 + $0xc0] sm:$0xff]
    %v308 = vld [vmem:[%s1 + $0xc8] sm:$0xff]
    %v309 = vld [vmem:[%s1 + $0xd0] sm:$0xff]
    %v310 = vld [vmem:[%s1 + $0xd8] sm:$0xff]
    %v311 = vld [vmem:[%s1 + $0xe0] sm:$0xff]
    %v312 = vld [vmem:[%s1 + $0xe8] sm:$0xff]
    %v313 = vld [vmem:[%s1 + $0xf0] sm:$0xff]
    %v314 = vld [vmem:[%s1 + $0xf8] sm:$0xff]
    %vm315 = vcmask 523264
    %v316 = vsel %vm315, %v283, 0.0
    %317 = vadd.xlane.f32.xlu0 %v316
    %v318 = vpop.xlane.xlu0 %317
    %v319 = vsel %vm315, %v284, 0.0
    %320 = vadd.xlane.f32.xlu0 %v319
    %v321 = vpop.xlane.xlu0 %320
    %v322 = vsel %vm315, %v285, 0.0
    %323 = vadd.xlane.f32.xlu0 %v322
    %v324 = vpop.xlane.xlu0 %323
    %v325 = vsel %vm315, %v286, 0.0
    %326 = vadd.xlane.f32.xlu0 %v325
    %v327 = vpop.xlane.xlu0 %326
    %v328 = vsel %vm315, %v287, 0.0
    %329 = vadd.xlane.f32.xlu0 %v328
    %v330 = vpop.xlane.xlu0 %329
    %v331 = vsel %vm315, %v288, 0.0
    %332 = vadd.xlane.f32.xlu0 %v331
    %v333 = vpop.xlane.xlu0 %332
    %v334 = vsel %vm315, %v289, 0.0
    %335 = vadd.xlane.f32.xlu0 %v334
    %v336 = vpop.xlane.xlu0 %335
    %v337 = vsel %vm315, %v290, 0.0
    %338 = vadd.xlane.f32.xlu0 %v337
    %v339 = vpop.xlane.xlu0 %338
    %v340 = vsel %vm315, %v291, 0.0
    %341 = vadd.xlane.f32.xlu0 %v340
    %v342 = vpop.xlane.xlu0 %341
    %v343 = vsel %vm315, %v292, 0.0
    %344 = vadd.xlane.f32.xlu0 %v343
    %v345 = vpop.xlane.xlu0 %344
    %v346 = vsel %vm315, %v293, 0.0
    %347 = vadd.xlane.f32.xlu0 %v346
    %v348 = vpop.xlane.xlu0 %347
    %v349 = vsel %vm315, %v294, 0.0
    %350 = vadd.xlane.f32.xlu0 %v349
    %v351 = vpop.xlane.xlu0 %350
    %v352 = vsel %vm315, %v295, 0.0
    %353 = vadd.xlane.f32.xlu0 %v352
    %v354 = vpop.xlane.xlu0 %353
    %v355 = vsel %vm315, %v296, 0.0
    %356 = vadd.xlane.f32.xlu0 %v355
    %v357 = vpop.xlane.xlu0 %356
    %v358 = vsel %vm315, %v297, 0.0
    %359 = vadd.xlane.f32.xlu0 %v358
    %v360 = vpop.xlane.xlu0 %359
    %v361 = vsel %vm315, %v298, 0.0
    %362 = vadd.xlane.f32.xlu0 %v361
    %v363 = vpop.xlane.xlu0 %362
    %v364 = vsel %vm315, %v299, 0.0
    %365 = vadd.xlane.f32.xlu0 %v364
    %v366 = vpop.xlane.xlu0 %365
    %v367 = vsel %vm315, %v300, 0.0
    %368 = vadd.xlane.f32.xlu0 %v367
    %v369 = vpop.xlane.xlu0 %368
    %v370 = vsel %vm315, %v301, 0.0
    %371 = vadd.xlane.f32.xlu0 %v370
    %v372 = vpop.xlane.xlu0 %371
    %v373 = vsel %vm315, %v302, 0.0
    %374 = vadd.xlane.f32.xlu0 %v373
    %v375 = vpop.xlane.xlu0 %374
    %v376 = vsel %vm315, %v303, 0.0
    %377 = vadd.xlane.f32.xlu0 %v376
    %v378 = vpop.xlane.xlu0 %377
    %v379 = vsel %vm315, %v304, 0.0
    %380 = vadd.xlane.f32.xlu0 %v379
    %v381 = vpop.xlane.xlu0 %380
    %v382 = vsel %vm315, %v305, 0.0
    %383 = vadd.xlane.f32.xlu0 %v382
    %v384 = vpop.xlane.xlu0 %383
    %v385 = vsel %vm315, %v306, 0.0
    %386 = vadd.xlane.f32.xlu0 %v385
    %v387 = vpop.xlane.xlu0 %386
    %v388 = vsel %vm315, %v307, 0.0
    %389 = vadd.xlane.f32.xlu0 %v388
    %v390 = vpop.xlane.xlu0 %389
    %v391 = vsel %vm315, %v308, 0.0
    %392 = vadd.xlane.f32.xlu0 %v391
    %v393 = vpop.xlane.xlu0 %392
    %v394 = vsel %vm315, %v309, 0.0
    %395 = vadd.xlane.f32.xlu0 %v394
    %v396 = vpop.xlane.xlu0 %395
    %v397 = vsel %vm315, %v310, 0.0
    %398 = vadd.xlane.f32.xlu0 %v397
    %v399 = vpop.xlane.xlu0 %398
    %v400 = vsel %vm315, %v311, 0.0
    %401 = vadd.xlane.f32.xlu0 %v400
    %v402 = vpop.xlane.xlu0 %401
    %v403 = vsel %vm315, %v312, 0.0
    %404 = vadd.xlane.f32.xlu0 %v403
    %v405 = vpop.xlane.xlu0 %404
    %v406 = vsel %vm315, %v313, 0.0
    %407 = vadd.xlane.f32.xlu0 %v406
    %v408 = vpop.xlane.xlu0 %407
    %v409 = vsel %vm315, %v314, 0.0
    %410 = vadd.xlane.f32.xlu0 %v409
    %v411 = vpop.xlane.xlu0 %410
    %v412 = vmul.f32 %v318, 0.015625
    %v413 = vmul.f32 %v321, 0.015625
    %v414 = vmul.f32 %v324, 0.015625
    %v415 = vmul.f32 %v327, 0.015625
    %v416 = vmul.f32 %v330, 0.015625
    %v417 = vmul.f32 %v333, 0.015625
    %v418 = vmul.f32 %v336, 0.015625
    %v419 = vmul.f32 %v339, 0.015625
    %v420 = vmul.f32 %v342, 0.015625
    %v421 = vmul.f32 %v345, 0.015625
    %v422 = vmul.f32 %v348, 0.015625
    %v423 = vmul.f32 %v351, 0.015625
    %v424 = vmul.f32 %v354, 0.015625
    %v425 = vmul.f32 %v357, 0.015625
    %v426 = vmul.f32 %v360, 0.015625
    %v427 = vmul.f32 %v363, 0.015625
    %v428 = vmul.f32 %v366, 0.015625
    %v429 = vmul.f32 %v369, 0.015625
    %v430 = vmul.f32 %v372, 0.015625
    %v431 = vmul.f32 %v375, 0.015625
    %v432 = vmul.f32 %v378, 0.015625
    %v433 = vmul.f32 %v381, 0.015625
    %v434 = vmul.f32 %v384, 0.015625
    %v435 = vmul.f32 %v387, 0.015625
    %v436 = vmul.f32 %v390, 0.015625
    %v437 = vmul.f32 %v393, 0.015625
    %v438 = vmul.f32 %v396, 0.015625
    %v439 = vmul.f32 %v399, 0.015625
    %v440 = vmul.f32 %v402, 0.015625
    %v441 = vmul.f32 %v405, 0.015625
    %v442 = vmul.f32 %v408, 0.015625
    %v443 = vmul.f32 %v411, 0.015625
    %v444 = vld [vmem:[%s2] sm:$0xff]
    %v445 = vld [vmem:[%s2 + $0x8] sm:$0xff]
    %v446 = vld [vmem:[%s2 + $0x10] sm:$0xff]
    %v447 = vld [vmem:[%s2 + $0x18] sm:$0xff]
    %v448 = vld [vmem:[%s3] sm:$0xff]
    %v449 = vld [vmem:[%s3 + $0x8] sm:$0xff]
    %v450 = vld [vmem:[%s3 + $0x10] sm:$0xff]
    %v451 = vld [vmem:[%s3 + $0x18] sm:$0xff]
    %v484 = vlaneseq
    %v485 = vand.u32 %v484, 127
    %v486 = vlaneseq
    %v487 = vshrl.u32 %v486, 7
    %v488 = vsub.s32 %v485, %v487
    %v489 = vrot.slane %v412, %v488
    %v490 = vadd.s32 %v485, 4294967288
    %v491 = vlaneseq
    %v492 = vshrl.u32 %v491, 7
    %v493 = vsub.s32 %v490, %v492
    %v494 = vrot.slane %v413, %v493
    %vm495 = vcmask 130112
    %v496 = vsel %vm495, %v494, %v489
    %v497 = vadd.s32 %v485, 4294967280
    %v498 = vlaneseq
    %v499 = vshrl.u32 %v498, 7
    %v500 = vsub.s32 %v497, %v499
    %v501 = vrot.slane %v414, %v500
    %vm502 = vcmask 195712
    %v503 = vsel %vm502, %v501, %v496
    %v504 = vadd.s32 %v485, 4294967272
    %v505 = vlaneseq
    %v506 = vshrl.u32 %v505, 7
    %v507 = vsub.s32 %v504, %v506
    %v508 = vrot.slane %v415, %v507
    %vm509 = vcmask 261312
    %v510 = vsel %vm509, %v508, %v503
    %v511 = vlaneseq
    %v512 = vshrl.u32 %v511, 7
    %v513 = vsub.s32 %v485, %v512
    %v514 = vrot.slane %v416, %v513
    %v515 = vlaneseq
    %v516 = vshrl.u32 %v515, 7
    %v517 = vsub.s32 %v490, %v516
    %v518 = vrot.slane %v417, %v517
    %v519 = vsel %vm495, %v518, %v514
    %v520 = vlaneseq
    %v521 = vshrl.u32 %v520, 7
    %v522 = vsub.s32 %v497, %v521
    %v523 = vrot.slane %v418, %v522
    %v524 = vsel %vm502, %v523, %v519
    %v525 = vlaneseq
    %v526 = vshrl.u32 %v525, 7
    %v527 = vsub.s32 %v504, %v526
    %v528 = vrot.slane %v419, %v527
    %v529 = vsel %vm509, %v528, %v524
    %v530 = vlaneseq
    %v531 = vshrl.u32 %v530, 7
    %v532 = vsub.s32 %v485, %v531
    %v533 = vrot.slane %v420, %v532
    %v534 = vlaneseq
    %v535 = vshrl.u32 %v534, 7
    %v536 = vsub.s32 %v490, %v535
    %v537 = vrot.slane %v421, %v536
    %v538 = vsel %vm495, %v537, %v533
    %v539 = vlaneseq
    %v540 = vshrl.u32 %v539, 7
    %v541 = vsub.s32 %v497, %v540
    %v542 = vrot.slane %v422, %v541
    %v543 = vsel %vm502, %v542, %v538
    %v544 = vlaneseq
    %v545 = vshrl.u32 %v544, 7
    %v546 = vsub.s32 %v504, %v545
    %v547 = vrot.slane %v423, %v546
    %v548 = vsel %vm509, %v547, %v543
    %v549 = vlaneseq
    %v550 = vshrl.u32 %v549, 7
    %v551 = vsub.s32 %v485, %v550
    %v552 = vrot.slane %v424, %v551
    %v553 = vlaneseq
    %v554 = vshrl.u32 %v553, 7
    %v555 = vsub.s32 %v490, %v554
    %v556 = vrot.slane %v425, %v555
    %v557 = vsel %vm495, %v556, %v552
    %v558 = vlaneseq
    %v559 = vshrl.u32 %v558, 7
    %v560 = vsub.s32 %v497, %v559
    %v561 = vrot.slane %v426, %v560
    %v562 = vsel %vm502, %v561, %v557
    %v563 = vlaneseq
    %v564 = vshrl.u32 %v563, 7
    %v565 = vsub.s32 %v504, %v564
    %v566 = vrot.slane %v427, %v565
    %v567 = vsel %vm509, %v566, %v562
    %v568 = vlaneseq
    %v569 = vshrl.u32 %v568, 7
    %v570 = vsub.s32 %v485, %v569
    %v571 = vrot.slane %v428, %v570
    %v572 = vlaneseq
    %v573 = vshrl.u32 %v572, 7
    %v574 = vsub.s32 %v490, %v573
    %v575 = vrot.slane %v429, %v574
    %v576 = vsel %vm495, %v575, %v571
    %v577 = vlaneseq
    %v578 = vshrl.u32 %v577, 7
    %v579 = vsub.s32 %v497, %v578
    %v580 = vrot.slane %v430, %v579
    %v581 = vsel %vm502, %v580, %v576
    %v582 = vlaneseq
    %v583 = vshrl.u32 %v582, 7
    %v584 = vsub.s32 %v504, %v583
    %v585 = vrot.slane %v431, %v584
    %v586 = vsel %vm509, %v585, %v581
    %v587 = vlaneseq
    %v588 = vshrl.u32 %v587, 7
    %v589 = vsub.s32 %v485, %v588
    %v590 = vrot.slane %v432, %v589
    %v591 = vlaneseq
    %v592 = vshrl.u32 %v591, 7
    %v593 = vsub.s32 %v490, %v592
    %v594 = vrot.slane %v433, %v593
    %v595 = vsel %vm495, %v594, %v590
    %v596 = vlaneseq
    %v597 = vshrl.u32 %v596, 7
    %v598 = vsub.s32 %v497, %v597
    %v599 = vrot.slane %v434, %v598
    %v600 = vsel %vm502, %v599, %v595
    %v601 = vlaneseq
    %v602 = vshrl.u32 %v601, 7
    %v603 = vsub.s32 %v504, %v602
    %v604 = vrot.slane %v435, %v603
    %v605 = vsel %vm509, %v604, %v600
    %v606 = vlaneseq
    %v607 = vshrl.u32 %v606, 7
    %v608 = vsub.s32 %v485, %v607
    %v609 = vrot.slane %v436, %v608
    %v610 = vlaneseq
    %v611 = vshrl.u32 %v610, 7
    %v612 = vsub.s32 %v490, %v611
    %v613 = vrot.slane %v437, %v612
    %v614 = vsel %vm495, %v613, %v609
    %v615 = vlaneseq
    %v616 = vshrl.u32 %v615, 7
    %v617 = vsub.s32 %v497, %v616
    %v618 = vrot.slane %v438, %v617
    %v619 = vsel %vm502, %v618, %v614
    %v620 = vlaneseq
    %v621 = vshrl.u32 %v620, 7
    %v622 = vsub.s32 %v504, %v621
    %v623 = vrot.slane %v439, %v622
    %v624 = vsel %vm509, %v623, %v619
    %v625 = vlaneseq
    %v626 = vshrl.u32 %v625, 7
    %v627 = vsub.s32 %v485, %v626
    %v628 = vrot.slane %v440, %v627
    %v629 = vlaneseq
    %v630 = vshrl.u32 %v629, 7
    %v631 = vsub.s32 %v490, %v630
    %v632 = vrot.slane %v441, %v631
    %v633 = vsel %vm495, %v632, %v628
    %v634 = vlaneseq
    %v635 = vshrl.u32 %v634, 7
    %v636 = vsub.s32 %v497, %v635
    %v637 = vrot.slane %v442, %v636
    %v638 = vsel %vm502, %v637, %v633
    %v639 = vlaneseq
    %v640 = vshrl.u32 %v639, 7
    %v641 = vsub.s32 %v504, %v640
    %v642 = vrot.slane %v443, %v641
    %v643 = vsel %vm509, %v642, %v638
    %vm644 = vcmask 1041409
    %v645 = vsel %vm644, %v529, %v510
    %vm646 = vcmask 1042434
    %v647 = vsel %vm646, %v548, %v645
    %vm648 = vcmask 1043459
    %v649 = vsel %vm648, %v567, %v647
    %vm650 = vcmask 1044484
    %v651 = vsel %vm650, %v586, %v649
    %vm652 = vcmask 1045509
    %v653 = vsel %vm652, %v605, %v651
    %vm654 = vcmask 1046534
    %v655 = vsel %vm654, %v624, %v653
    %vm656 = vcmask 1047559
    %v657 = vsel %vm656, %v643, %v655
    %v658 = vsel %vm106, %v657, 0
    %660 = vmatprep.subr.mxu0 0.0
    %661 = vmatpush1.msra.mxu0 %v448
    %662 = vmatprep.subr.mxu0 0.0
    %663 = vmatpush1.msra.mxu0 %v449
    %664 = vmatprep.subr.mxu0 0.0
    %665 = vmatpush1.msra.mxu0 %v450
    %666 = vmatprep.subr.mxu0 0.0
    %667 = vmatpush1.msra.mxu0 %v451
    %668 = vmatprep.subr.mxu0 0.0
    %669 = vmatpush1.msra.mxu0 0.0
    %670 = vmatprep.subr.mxu0 0.0
    %671 = vmatpush1.msra.mxu0 0.0
    %672 = vmatprep.subr.mxu0 0.0
    %673 = vmatpush1.msra.mxu0 0.0
    %674 = vmatprep.subr.mxu0 0.0
    %675 = vmatpush1.msra.mxu0 0.0
    %676 = vmatprep.subr.mxu0 0.0
    %677 = vmatpush1.msra.mxu0 0.0
    %678 = vmatprep.subr.mxu0 0.0
    %679 = vmatpush1.msra.mxu0 0.0
    %680 = vmatprep.subr.mxu0 0.0
    %681 = vmatpush1.msra.mxu0 0.0
    %682 = vmatprep.subr.mxu0 0.0
    %683 = vmatpush1.msra.mxu0 0.0
    %684 = vmatprep.subr.mxu0 0.0
    %685 = vmatpush1.msra.mxu0 0.0
    %686 = vmatprep.subr.mxu0 0.0
    %687 = vmatpush1.msra.mxu0 0.0
    %688 = vmatprep.subr.mxu0 0.0
    %689 = vmatpush1.msra.mxu0 0.0
    %690 = vmatprep.subr.mxu0 0.0
    %691 = vmatpush1.msra.mxu0 0.0
    %692 = vmatprep.subr.mxu0 0.0
    %693 = vmatpush1.msra.mxu0 0.0
    %694 = vmatprep.subr.mxu0 0.0
    %695 = vmatpush1.msra.mxu0 0.0
    %696 = vmatprep.subr.mxu0 0.0
    %697 = vmatpush1.msra.mxu0 0.0
    %698 = vmatprep.subr.mxu0 0.0
    %699 = vmatpush1.msra.mxu0 0.0
    %700 = vmatprep.subr.mxu0 0.0
    %701 = vmatpush1.msra.mxu0 0.0
    %702 = vmatprep.subr.mxu0 0.0
    %703 = vmatpush1.msra.mxu0 0.0
    %704 = vmatprep.subr.mxu0 0.0
    %705 = vmatpush1.msra.mxu0 0.0
    %706 = vmatprep.subr.mxu0 0.0
    %707 = vmatpush1.msra.mxu0 0.0
    %708 = vmatprep.subr.mxu0 0.0
    %709 = vmatpush1.msra.mxu0 0.0
    %710 = vmatprep.subr.mxu0 0.0
    %711 = vmatpush1.msra.mxu0 0.0
    %712 = vmatprep.subr.mxu0 0.0
    %713 = vmatpush1.msra.mxu0 0.0
    %714 = vmatprep.subr.mxu0 0.0
    %715 = vmatpush1.msra.mxu0 0.0
    %716 = vmatprep.subr.mxu0 0.0
    %717 = vmatpush1.msra.mxu0 0.0
    %718 = vmatprep.subr.mxu0 0.0
    %719 = vmatpush1.msra.mxu0 0.0
    %720 = vmatprep.subr.mxu0 0.0
    %721 = vmatpush1.msra.mxu0 0.0
    %722 = vmatprep.subr.mxu0 0.0
    %723 = vmatpush1.msra.mxu0 0.0
    %724 = vmatprep.mubr.f32.mxu0 0.0
    %725 = vmatmul.mubr.f32.gmra.mrb[0].mxu0 %v658
    %v726 = vpop.f32.mrb[0].mxu0
    %v727 = vadd.f32 0.0, %v726
    %v728 = vpop.f32.mrb[0].mxu0
    %729 = vdwg.mxu0
    %v738 = vsel %vm644, %v276, %v275
    %v739 = vsel %vm646, %v277, %v738
    %v740 = vsel %vm648, %v278, %v739
    %v741 = vsel %vm650, %v279, %v740
    %v742 = vsel %vm652, %v280, %v741
    %v743 = vsel %vm654, %v281, %v742
    %v744 = vsel %vm656, %v282, %v743
    %v745 = vsel %vm106, %v744, 0
    %747 = vmatprep.subr.mxu0 0.0
    %748 = vmatpush1.msra.mxu0 %v444
    %749 = vmatprep.subr.mxu0 0.0
    %750 = vmatpush1.msra.mxu0 %v445
    %751 = vmatprep.subr.mxu0 0.0
    %752 = vmatpush1.msra.mxu0 %v446
    %753 = vmatprep.subr.mxu0 0.0
    %754 = vmatpush1.msra.mxu0 %v447
    %755 = vmatprep.subr.mxu0 0.0
    %756 = vmatpush1.msra.mxu0 0.0
    %757 = vmatprep.subr.mxu0 0.0
    %758 = vmatpush1.msra.mxu0 0.0
    %759 = vmatprep.subr.mxu0 0.0
    %760 = vmatpush1.msra.mxu0 0.0
    %761 = vmatprep.subr.mxu0 0.0
    %762 = vmatpush1.msra.mxu0 0.0
    %763 = vmatprep.subr.mxu0 0.0
    %764 = vmatpush1.msra.mxu0 0.0
    %765 = vmatprep.subr.mxu0 0.0
    %766 = vmatpush1.msra.mxu0 0.0
    %767 = vmatprep.subr.mxu0 0.0
    %768 = vmatpush1.msra.mxu0 0.0
    %769 = vmatprep.subr.mxu0 0.0
    %770 = vmatpush1.msra.mxu0 0.0
    %771 = vmatprep.subr.mxu0 0.0
    %772 = vmatpush1.msra.mxu0 0.0
    %773 = vmatprep.subr.mxu0 0.0
    %774 = vmatpush1.msra.mxu0 0.0
    %775 = vmatprep.subr.mxu0 0.0
    %776 = vmatpush1.msra.mxu0 0.0
    %777 = vmatprep.subr.mxu0 0.0
    %778 = vmatpush1.msra.mxu0 0.0
    %779 = vmatprep.subr.mxu0 0.0
    %780 = vmatpush1.msra.mxu0 0.0
    %781 = vmatprep.subr.mxu0 0.0
    %782 = vmatpush1.msra.mxu0 0.0
    %783 = vmatprep.subr.mxu0 0.0
    %784 = vmatpush1.msra.mxu0 0.0
    %785 = vmatprep.subr.mxu0 0.0
    %786 = vmatpush1.msra.mxu0 0.0
    %787 = vmatprep.subr.mxu0 0.0
    %788 = vmatpush1.msra.mxu0 0.0
    %789 = vmatprep.subr.mxu0 0.0
    %790 = vmatpush1.msra.mxu0 0.0
    %791 = vmatprep.subr.mxu0 0.0
    %792 = vmatpush1.msra.mxu0 0.0
    %793 = vmatprep.subr.mxu0 0.0
    %794 = vmatpush1.msra.mxu0 0.0
    %795 = vmatprep.subr.mxu0 0.0
    %796 = vmatpush1.msra.mxu0 0.0
    %797 = vmatprep.subr.mxu0 0.0
    %798 = vmatpush1.msra.mxu0 0.0
    %799 = vmatprep.subr.mxu0 0.0
    %800 = vmatpush1.msra.mxu0 0.0
    %801 = vmatprep.subr.mxu0 0.0
    %802 = vmatpush1.msra.mxu0 0.0
    %803 = vmatprep.subr.mxu0 0.0
    %804 = vmatpush1.msra.mxu0 0.0
    %805 = vmatprep.subr.mxu0 0.0
    %806 = vmatpush1.msra.mxu0 0.0
    %807 = vmatprep.subr.mxu0 0.0
    %808 = vmatpush1.msra.mxu0 0.0
    %809 = vmatprep.subr.mxu0 0.0
    %810 = vmatpush1.msra.mxu0 0.0
    %811 = vmatprep.mubr.f32.mxu0 0.0
    %812 = vmatmul.mubr.f32.gmra.mrb[0].mxu0 %v745
    %v813 = vpop.f32.mrb[0].mxu0
    %v814 = vadd.f32 %v727, %v813
    %v815 = vpop.f32.mrb[0].mxu0
    %816 = vdwg.mxu0
    %v817 = vld [vmem:[%s4] sm:$0x1]
    %v819 = vlaneseq
    %v820 = vshrl.u32 %v819, 7
    %v821 = vsub.s32 0, %v820
    %v822 = vrot.slane %v817, %v821
    %v824 = vadd.f32 %v814, %v822
    %v825 = vmul.f32 %v824, 0.5
    %v826 = vmul.f32 %v824, 0.70710677
    %v827 = verf.f32.pop %v826
    %v828 = vadd.f32 %v827, 1.0
    %v829 = vmul.f32 %v825, %v828
    %830 = vadd.xlane.f32.xlu0 %v829
    %v831 = vpop.xlane.xlu0 %830
    %v832 = vmul.f32 %v831, 0.03125
    %v833 = vsub.f32 %v829, %v832
    %vm834 = vcmp.lt.s32.totalorder %v485, 32
    %v835 = vsel %vm834, 1, 0
    %v836 = vcvt.s32.f32 %v835
    %v837 = vmul.f32 %v833, %v836
    %v838 = vmul.f32 %v837, %v837
    %839 = vadd.xlane.f32.xlu0 %v838
    %v840 = vpop.xlane.xlu0 %839
    %v841 = vmul.f32 %v840, 0.03125
    %v842 = vadd.f32 %v841, 1e-05
    %v843 = vrsqrt.pop %v842
    %v844 = vmul.f32 %v837, %v843
    %v845 = vld [vmem:[%s5] sm:$0x1]
    %v847 = vlaneseq
    %v848 = vshrl.u32 %v847, 7
    %v849 = vsub.s32 0, %v848
    %v850 = vrot.slane %v845, %v849
    %v852 = vmul.f32 %v844, %v850
    %v853 = vld [vmem:[%s6] sm:$0x1]
    %v855 = vlaneseq
    %v856 = vshrl.u32 %v855, 7
    %v857 = vsub.s32 0, %v856
    %v858 = vrot.slane %v853, %v857
    %v860 = vadd.f32 %v852, %v858
    %v861 = vld [vmem:[%s7] sm:$0xff]
    %v862 = vld [vmem:[%s7 + $0x8] sm:$0xff]
    %v863 = vld [vmem:[%s7 + $0x10] sm:$0xff]
    %v864 = vld [vmem:[%s7 + $0x18] sm:$0xff]
    %v865 = vld [vmem:[%s7 + $0x20] sm:$0xff]
    %v866 = vld [vmem:[%s7 + $0x28] sm:$0xff]
    %v867 = vld [vmem:[%s7 + $0x30] sm:$0xff]
    %v868 = vld [vmem:[%s7 + $0x38] sm:$0xff]
    %v869 = vld [vmem:[%s7 + $0x40] sm:$0xff]
    %v870 = vld [vmem:[%s7 + $0x48] sm:$0xff]
    %v871 = vld [vmem:[%s7 + $0x50] sm:$0xff]
    %v872 = vld [vmem:[%s7 + $0x58] sm:$0xff]
    %v873 = vld [vmem:[%s7 + $0x60] sm:$0xff]
    %v874 = vld [vmem:[%s7 + $0x68] sm:$0xff]
    %v875 = vld [vmem:[%s7 + $0x70] sm:$0xff]
    %v876 = vld [vmem:[%s7 + $0x78] sm:$0xff]
    %v877 = vld [vmem:[%s8] sm:$0x1]
    %v879 = vlaneseq
    %v880 = vshrl.u32 %v879, 7
    %v881 = vsub.s32 0, %v880
    %v882 = vrot.slane %v877, %v881
    %884 = vmatprep.subr.mxu0 0.0
    %885 = vmatpush1.msra.mxu0 %v861
    %886 = vmatprep.subr.mxu0 0.0
    %887 = vmatpush1.msra.mxu0 %v862
    %888 = vmatprep.subr.mxu0 0.0
    %889 = vmatpush1.msra.mxu0 %v863
    %890 = vmatprep.subr.mxu0 0.0
    %891 = vmatpush1.msra.mxu0 %v864
    %892 = vmatprep.subr.mxu0 0.0
    %893 = vmatpush1.msra.mxu0 %v865
    %894 = vmatprep.subr.mxu0 0.0
    %895 = vmatpush1.msra.mxu0 %v866
    %896 = vmatprep.subr.mxu0 0.0
    %897 = vmatpush1.msra.mxu0 %v867
    %898 = vmatprep.subr.mxu0 0.0
    %899 = vmatpush1.msra.mxu0 %v868
    %900 = vmatprep.subr.mxu0 0.0
    %901 = vmatpush1.msra.mxu0 %v869
    %902 = vmatprep.subr.mxu0 0.0
    %903 = vmatpush1.msra.mxu0 %v870
    %904 = vmatprep.subr.mxu0 0.0
    %905 = vmatpush1.msra.mxu0 %v871
    %906 = vmatprep.subr.mxu0 0.0
    %907 = vmatpush1.msra.mxu0 %v872
    %908 = vmatprep.subr.mxu0 0.0
    %909 = vmatpush1.msra.mxu0 %v873
    %910 = vmatprep.subr.mxu0 0.0
    %911 = vmatpush1.msra.mxu0 %v874
    %912 = vmatprep.subr.mxu0 0.0
    %913 = vmatpush1.msra.mxu0 %v875
    %914 = vmatprep.subr.mxu0 0.0
    %915 = vmatpush1.msra.mxu0 %v876
    %916 = vmatprep.subr.mxu0 0.0
    %917 = vmatpush1.msra.mxu0 0.0
    %918 = vmatprep.subr.mxu0 0.0
    %919 = vmatpush1.msra.mxu0 0.0
    %920 = vmatprep.subr.mxu0 0.0
    %921 = vmatpush1.msra.mxu0 0.0
    %922 = vmatprep.subr.mxu0 0.0
    %923 = vmatpush1.msra.mxu0 0.0
    %924 = vmatprep.subr.mxu0 0.0
    %925 = vmatpush1.msra.mxu0 0.0
    %926 = vmatprep.subr.mxu0 0.0
    %927 = vmatpush1.msra.mxu0 0.0
    %928 = vmatprep.subr.mxu0 0.0
    %929 = vmatpush1.msra.mxu0 0.0
    %930 = vmatprep.subr.mxu0 0.0
    %931 = vmatpush1.msra.mxu0 0.0
    %932 = vmatprep.subr.mxu0 0.0
    %933 = vmatpush1.msra.mxu0 0.0
    %934 = vmatprep.subr.mxu0 0.0
    %935 = vmatpush1.msra.mxu0 0.0
    %936 = vmatprep.subr.mxu0 0.0
    %937 = vmatpush1.msra.mxu0 0.0
    %938 = vmatprep.subr.mxu0 0.0
    %939 = vmatpush1.msra.mxu0 0.0
    %940 = vmatprep.subr.mxu0 0.0
    %941 = vmatpush1.msra.mxu0 0.0
    %942 = vmatprep.subr.mxu0 0.0
    %943 = vmatpush1.msra.mxu0 0.0
    %944 = vmatprep.subr.mxu0 0.0
    %945 = vmatpush1.msra.mxu0 0.0
    %946 = vmatprep.subr.mxu0 0.0
    %947 = vmatpush1.msra.mxu0 0.0
    %948 = vmatprep.mubr.f32.mxu0 0.0
    %949 = vmatmul.mubr.f32.gmra.mrb[0].mxu0 %v860
    %v950 = vpop.f32.mrb[0].mxu0
    %v951 = vadd.f32 %v882, %v950
    %v952 = vpop.f32.mrb[0].mxu0
    %953 = vdwg.mxu0
    %954 = vst [vmem:[#allocation2] sm:$0xff] %v951
    %v955 = vld [vmem:[%s9] sm:$0xff]
    %v956 = vld [vmem:[%s9 + $0x8] sm:$0xff]
    %v957 = vld [vmem:[%s9 + $0x10] sm:$0xff]
    %v958 = vld [vmem:[%s9 + $0x18] sm:$0xff]
    %v959 = vld [vmem:[%s9 + $0x20] sm:$0xff]
    %v960 = vld [vmem:[%s9 + $0x28] sm:$0xff]
    %v961 = vld [vmem:[%s9 + $0x30] sm:$0xff]
    %v962 = vld [vmem:[%s9 + $0x38] sm:$0xff]
    %v963 = vld [vmem:[%s9 + $0x40] sm:$0xff]
    %v964 = vld [vmem:[%s9 + $0x48] sm:$0xff]
    %v965 = vld [vmem:[%s9 + $0x50] sm:$0xff]
    %v966 = vld [vmem:[%s9 + $0x58] sm:$0xff]
    %v967 = vld [vmem:[%s9 + $0x60] sm:$0xff]
    %v968 = vld [vmem:[%s9 + $0x68] sm:$0xff]
    %v969 = vld [vmem:[%s9 + $0x70] sm:$0xff]
    %v970 = vld [vmem:[%s9 + $0x78] sm:$0xff]
    %v971 = vld [vmem:[%s10] sm:$0x1]
    %v973 = vlaneseq
    %v974 = vshrl.u32 %v973, 7
    %v975 = vsub.s32 0, %v974
    %v976 = vrot.slane %v971, %v975
    %978 = vmatprep.subr.mxu0 0.0
    %979 = vmatpush1.msra.mxu0 %v955
    %980 = vmatprep.subr.mxu0 0.0
    %981 = vmatpush1.msra.mxu0 %v956
    %982 = vmatprep.subr.mxu0 0.0
    %983 = vmatpush1.msra.mxu0 %v957
    %984 = vmatprep.subr.mxu0 0.0
    %985 = vmatpush1.msra.mxu0 %v958
    %986 = vmatprep.subr.mxu0 0.0
    %987 = vmatpush1.msra.mxu0 %v959
    %988 = vmatprep.subr.mxu0 0.0
    %989 = vmatpush1.msra.mxu0 %v960
    %990 = vmatprep.subr.mxu0 0.0
    %991 = vmatpush1.msra.mxu0 %v961
    %992 = vmatprep.subr.mxu0 0.0
    %993 = vmatpush1.msra.mxu0 %v962
    %994 = vmatprep.subr.mxu0 0.0
    %995 = vmatpush1.msra.mxu0 %v963
    %996 = vmatprep.subr.mxu0 0.0
    %997 = vmatpush1.msra.mxu0 %v964
    %998 = vmatprep.subr.mxu0 0.0
    %999 = vmatpush1.msra.mxu0 %v965
    %1000 = vmatprep.subr.mxu0 0.0
    %1001 = vmatpush1.msra.mxu0 %v966
    %1002 = vmatprep.subr.mxu0 0.0
    %1003 = vmatpush1.msra.mxu0 %v967
    %1004 = vmatprep.subr.mxu0 0.0
    %1005 = vmatpush1.msra.mxu0 %v968
    %1006 = vmatprep.subr.mxu0 0.0
    %1007 = vmatpush1.msra.mxu0 %v969
    %1008 = vmatprep.subr.mxu0 0.0
    %1009 = vmatpush1.msra.mxu0 %v970
    %1010 = vmatprep.subr.mxu0 0.0
    %1011 = vmatpush1.msra.mxu0 0.0
    %1012 = vmatprep.subr.mxu0 0.0
    %1013 = vmatpush1.msra.mxu0 0.0
    %1014 = vmatprep.subr.mxu0 0.0
    %1015 = vmatpush1.msra.mxu0 0.0
    %1016 = vmatprep.subr.mxu0 0.0
    %1017 = vmatpush1.msra.mxu0 0.0
    %1018 = vmatprep.subr.mxu0 0.0
    %1019 = vmatpush1.msra.mxu0 0.0
    %1020 = vmatprep.subr.mxu0 0.0
    %1021 = vmatpush1.msra.mxu0 0.0
    %1022 = vmatprep.subr.mxu0 0.0
    %1023 = vmatpush1.msra.mxu0 0.0
    %1024 = vmatprep.subr.mxu0 0.0
    %1025 = vmatpush1.msra.mxu0 0.0
    %1026 = vmatprep.subr.mxu0 0.0
    %1027 = vmatpush1.msra.mxu0 0.0
    %1028 = vmatprep.subr.mxu0 0.0
    %1029 = vmatpush1.msra.mxu0 0.0
    %1030 = vmatprep.subr.mxu0 0.0
    %1031 = vmatpush1.msra.mxu0 0.0
    %1032 = vmatprep.subr.mxu0 0.0
    %1033 = vmatpush1.msra.mxu0 0.0
    %1034 = vmatprep.subr.mxu0 0.0
    %1035 = vmatpush1.msra.mxu0 0.0
    %1036 = vmatprep.subr.mxu0 0.0
    %1037 = vmatpush1.msra.mxu0 0.0
    %1038 = vmatprep.subr.mxu0 0.0
    %1039 = vmatpush1.msra.mxu0 0.0
    %1040 = vmatprep.subr.mxu0 0.0
    %1041 = vmatpush1.msra.mxu0 0.0
    %1042 = vmatprep.mubr.f32.mxu0 0.0
    %1043 = vmatmul.mubr.f32.gmra.mrb[0].mxu0 %v860
    %v1044 = vpop.f32.mrb[0].mxu0
    %v1045 = vadd.f32 %v976, %v1044
    %v1046 = vpop.f32.mrb[0].mxu0
    %1047 = vdwg.mxu0
    %v1048 = vtanh.pop %v1045
    %1049 = vst [vmem:[#allocation4] sm:$0xff] %v1048
    // Predicated region
    $region46: #{tpu_custom_call.1} parent=1 // pred_check
      _
    $region47: #{tpu_custom_call.1} parent=1 // pred_check_branch
      %1051 = sbr.rel (0) target = $region49
    $region48: #{tpu_custom_call.1} parent=1 // pred_region
      %s1053 = ssub.s32 128, 128
      %1054 = vsyncadd [#allocation3], %s1053
      %s1056 = sshll.u32 [#allocation2], 4
      %s1057 = int_to_ptr.vmem [resolvable:$true] %s1056
      %1059 = dma.vmem_to_hbm [thread:$0]  %s1057, 128, %s11, [#allocation3]
    $region49: #{tpu_custom_call.1} parent=1 // pred_fallthru
      _
    // Predicated region
    $region50: #{tpu_custom_call.1} parent=1 // pred_check
      _
    $region51: #{tpu_custom_call.1} parent=1 // pred_check_branch
      %1061 = sbr.rel (0) target = $region53
    $region52: #{tpu_custom_call.1} parent=1 // pred_region
      %s1063 = ssub.s32 128, 128
      %1064 = vsyncadd [#allocation5], %s1063
      %s1066 = sshll.u32 [#allocation4], 4
      %s1067 = int_to_ptr.vmem [resolvable:$true] %s1066
      %1069 = dma.vmem_to_hbm [thread:$0]  %s1067, 128, %s12, [#allocation5]
    $region53: #{tpu_custom_call.1} parent=1 // pred_fallthru
      _
    // Predicated region
    $region54: #{tpu_custom_call.1} parent=1 // pred_check
      _
    $region55: #{tpu_custom_call.1} parent=1 // pred_check_branch
      %1071 = sbr.rel (0) target = $region57
    $region56: #{tpu_custom_call.1} parent=1 // pred_region
      %1072 = dma.done [#allocation3], 128
    $region57: #{tpu_custom_call.1} parent=1 // pred_fallthru
      _
    // Predicated region
    $region58: #{tpu_custom_call.1} parent=1 // pred_check
      _
    $region59: #{tpu_custom_call.1} parent=1 // pred_check_branch
      %1074 = sbr.rel (0) target = $region61
    $region60: #{tpu_custom_call.1} parent=1 // pred_region
      %1075 = dma.done [#allocation5], 128
    $region61: #{tpu_custom_call.1} parent=1 // pred_fallthru
      _
    %1076 = vsyncpa [#allocation3], 1
    %1077 = vsyncpa [#allocation5], 1

</llo_original>
